<compile_context>
chip_gen: v6e
topology: v6e:2x2x1
jax: 0.10.0
libtpu: 0.0.40
codegen_flags: <defaults>
</compile_context>

<pallas_src>
import functools

import jax
import jax.numpy as jnp
from jax.experimental import pallas as pl
from jax.experimental.pallas import tpu as pltpu


def _recurrent_block_kernel(x_ref, w_ref, smat_ref, gamma_ref, beta_ref, o_ref,
                            *, t: int, eps: float, img_h: int):
    """Whole RecurrentBlock forward on a lane-dense (B*H, W*C) slab in VMEM."""
    BH, WC = x_ref.shape
    x = x_ref[...]

    # Per-image row masks for the vertical taps, hoisted out of the recurrence.
    # Row h==0 has no "h-1" neighbour, row h==H-1 has no "h+1" neighbour.
    row = jax.lax.broadcasted_iota(jnp.int32, (BH, WC), 0) % img_h
    mask_up = (row != 0).astype(jnp.float32)            # valid for kh = 0 (dy = -1)
    mask_dn = (row != img_h - 1).astype(jnp.float32)    # valid for kh = 2 (dy = +1)

    gamma = gamma_ref[...]
    beta = beta_ref[...]
    smat = smat_ref[...]            # channel-sum matrix, already scaled by 1/N

    def conv_bn_relu(inp):
        # Vertical taps: XLU sublane roll + boundary mask; horizontal taps and
        # channel mixing are folded into the banded (W*C, W*C) weight matrices,
        # so the whole 3x3 "same" conv is 3 lane-dense MXU matmuls.
        up = pltpu.roll(inp, shift=1, axis=0) * mask_up          # up[r] = inp[r-1]
        dn = pltpu.roll(inp, shift=BH - 1, axis=0) * mask_dn     # dn[r] = inp[r+1]
        acc = jnp.dot(up, w_ref[0], preferred_element_type=jnp.float32)
        acc += jnp.dot(inp, w_ref[1], preferred_element_type=jnp.float32)
        acc += jnp.dot(dn, w_ref[2], preferred_element_type=jnp.float32)
        # Conv bias intentionally omitted: with BatchNorm in batch-stats
        # (training) mode the per-channel bias is cancelled exactly by the
        # mean subtraction below.

        # One-pass BatchNorm statistics: sublane row-reduce first, then tiny
        # (1,WC)x(WC,WC) matmuls against the pre-scaled channel-sum matrix so
        # mean / E[x^2] come out already broadcast in the packed lane layout.
        rsum = jnp.sum(acc, axis=0, keepdims=True)               # (1, W*C)
        rsumsq = jnp.sum(acc * acc, axis=0, keepdims=True)       # (1, W*C)
        mean = jnp.dot(rsum, smat, preferred_element_type=jnp.float32)
        meansq = jnp.dot(rsumsq, smat, preferred_element_type=jnp.float32)
        var = meansq - mean * mean
        scale = gamma * jax.lax.rsqrt(var + eps)                 # (1, W*C)
        shift = beta - mean * scale                              # (1, W*C)
        return jnp.maximum(acc * scale + shift, 0.0)             # fused BN + ReLU

    x1 = conv_bn_relu(x)
    for _ in range(t):
        x1 = conv_bn_relu(x + x1)
    o_ref[...] = x1.astype(o_ref.dtype)


def recurrent_block(x_nchw, w_oihw, bias, gamma, beta, *, t=2, eps=1e-5):
    """Wrapper: NCHW in / NCHW out, matching the PyTorch module."""
    B, C, H, W = x_nchw.shape
    BH, WC = B * H, W * C

    # ---- plain-JAX layout plumbing (free, outside the kernel) --------------
    # Activations: NCHW -> NHWC -> lane-dense (B*H, W*C) slab.
    x_packed = jnp.transpose(x_nchw, (0, 2, 3, 1)).astype(jnp.float32)
    x_packed = x_packed.reshape(BH, WC)

    # Conv weight (Cout, Cin, 3, 3) -> three banded (W*C, W*C) matrices, one
    # per vertical tap kh.  The horizontal taps / channel mixing live in the
    # band; the w=0 / w=W-1 columns automatically realize the "same" padding.
    w_k = jnp.transpose(w_oihw, (2, 3, 1, 0)).astype(jnp.float32)   # (kh,kw,Cin,Cout)
    win = jnp.arange(W)[:, None]
    wout = jnp.arange(W)[None, :]
    kw_idx = win - wout + 1                                          # (W_in, W_out)
    valid = (kw_idx >= 0) & (kw_idx <= 2)
    band = w_k[:, jnp.clip(kw_idx, 0, 2)]                            # (3,Win,Wout,Cin,Cout)
    band = jnp.where(valid[None, :, :, None, None], band, 0.0)
    w_mat = jnp.transpose(band, (0, 1, 3, 2, 4)).reshape(3, WC, WC)  # (kh, Win*Cin, Wout*Cout)

    # Channel-sum matrix for BN stats in the packed layout, pre-scaled by 1/N
    # so the kernel's stats matmul produces the mean / E[x^2] directly.
    lane = jnp.arange(WC)
    inv_n = 1.0 / float(B * H * W)
    smat = (lane[:, None] % C == lane[None, :] % C).astype(jnp.float32) * inv_n

    gamma_p = jnp.tile(gamma.astype(jnp.float32), W).reshape(1, WC)
    beta_p = jnp.tile(beta.astype(jnp.float32), W).reshape(1, WC)
    del bias  # exactly cancelled by training-mode BatchNorm mean subtraction

    # TODO(synk): for real R2U-Net sizes (W*C >> 128 or working set > VMEM,
    # esp. v7x's 64 MiB), tile H/B/channels over a parallel grid and switch BN
    # to a two-pass (stats pass + normalize pass) scheme.
    kernel = functools.partial(_recurrent_block_kernel, t=t, eps=eps, img_h=H)

    grid_spec = pltpu.PrefetchScalarGridSpec(
        num_scalar_prefetch=0,
        grid=(1,),
        in_specs=[
            pl.BlockSpec((BH, WC), lambda i: (0, 0)),
            pl.BlockSpec((3, WC, WC), lambda i: (0, 0, 0)),
            pl.BlockSpec((WC, WC), lambda i: (0, 0)),
            pl.BlockSpec((1, WC), lambda i: (0, 0)),
            pl.BlockSpec((1, WC), lambda i: (0, 0)),
        ],
        out_specs=pl.BlockSpec((BH, WC), lambda i: (0, 0)),
    )
    out_packed = pl.pallas_call(
        kernel,
        out_shape=jax.ShapeDtypeStruct((BH, WC), jnp.float32),
        grid_spec=grid_spec,
        compiler_params=pltpu.CompilerParams(
            dimension_semantics=("arbitrary",),
            vmem_limit_bytes=16 * 1024 * 1024),
    )(x_packed, w_mat, smat, gamma_p, beta_p)

    out_nhwc = out_packed.reshape(B, H, W, C)
    return jnp.transpose(out_nhwc, (0, 3, 1, 2))                    # back to NCHW


def _reference(x_nchw, w_oihw, bias, gamma, beta, *, t=2, eps=1e-5):
    """Pure-JAX reference mirroring the PyTorch forward (training-mode BN)."""
    def conv_bn_relu(x):
        y = jax.lax.conv_general_dilated(
            x, w_oihw, window_strides=(1, 1), padding="SAME",
            dimension_numbers=("NCHW", "OIHW", "NCHW"))
        y = y + bias.reshape(1, -1, 1, 1)
        mean = jnp.mean(y, axis=(0, 2, 3), keepdims=True)
        var = jnp.mean((y - mean) ** 2, axis=(0, 2, 3), keepdims=True)
        y = (y - mean) * jax.lax.rsqrt(var + eps)
        y = y * gamma.reshape(1, -1, 1, 1) + beta.reshape(1, -1, 1, 1)
        return jnp.maximum(y, 0.0)

    x1 = conv_bn_relu(x_nchw)
    for _ in range(t):
        x1 = conv_bn_relu(x_nchw + x1)
    return x1


if __name__ == "__main__":
    B, C, H, W = 2, 8, 16, 16     # W * C = 128 -> exactly lane-dense packing
    t = 2

    key = jax.random.PRNGKey(0)
    kx, kw, kb = jax.random.split(key, 3)

    x = jax.random.normal(kx, (B, C, H, W), dtype=jnp.float32)

    # Deterministic PyTorch-like init: Conv2d kaiming-uniform-ish bounds,
    # BatchNorm gamma=1, beta=0.
    fan_in = C * 3 * 3
    bound = 1.0 / jnp.sqrt(jnp.float32(fan_in))
    w_oihw = jax.random.uniform(kw, (C, C, 3, 3), jnp.float32, -bound, bound)
    bias = jax.random.uniform(kb, (C,), jnp.float32, -bound, bound)
    gamma = jnp.ones((C,), jnp.float32)
    beta = jnp.zeros((C,), jnp.float32)

    out = recurrent_block(x, w_oihw, bias, gamma, beta, t=t)
    out = jax.block_until_ready(out)

    ref = jax.block_until_ready(_reference(x, w_oihw, bias, gamma, beta, t=t))
    max_err = float(jnp.max(jnp.abs(out - ref)))
    assert out.shape == (B, C, H, W)
    assert max_err < 1e-3, f"mismatch vs reference: max abs err = {max_err}"

    print("KERNEL_OK")
</pallas_src>

<mosaic_0001>
module attributes {stable_mosaic.version = 11 : i64} {
  func.func @_recurrent_block_kernel(%arg0: i32, %arg1: memref<32x128xf32, #tpu.memory_space<vmem>>, %arg2: memref<3x128x128xf32, #tpu.memory_space<vmem>>, %arg3: memref<128x128xf32, #tpu.memory_space<vmem>>, %arg4: memref<1x128xf32, #tpu.memory_space<vmem>>, %arg5: memref<1x128xf32, #tpu.memory_space<vmem>>, %arg6: memref<32x128xf32, #tpu.memory_space<vmem>>) attributes {dimension_semantics = [#tpu.dimension_semantics<arbitrary>], iteration_bounds = array<i64: 1>, scalar_prefetch = 0 : i64, scratch_operands = 0 : i64, tpu.core_type = #tpu.core_type<tc>, window_params = [{pipeline_mode = #tpu.pipeline_mode<synchronous>, transform_indices = @transform_0, window_bounds = array<i64: 32, 128>}, {pipeline_mode = #tpu.pipeline_mode<synchronous>, transform_indices = @transform_1, window_bounds = array<i64: 3, 128, 128>}, {pipeline_mode = #tpu.pipeline_mode<synchronous>, transform_indices = @transform_2, window_bounds = array<i64: 128, 128>}, {pipeline_mode = #tpu.pipeline_mode<synchronous>, transform_indices = @transform_3, window_bounds = array<i64: 1, 128>}, {pipeline_mode = #tpu.pipeline_mode<synchronous>, transform_indices = @transform_4, window_bounds = array<i64: 1, 128>}, {pipeline_mode = #tpu.pipeline_mode<synchronous>, transform_indices = @transform_5, window_bounds = array<i64: 32, 128>}]} {
    %c0 = arith.constant 0 : index
    %c0_0 = arith.constant 0 : index
    %0 = vector.load %arg1[%c0, %c0_0] : memref<32x128xf32, #tpu.memory_space<vmem>>, vector<32x128xf32>
    %1 = tpu.iota {dimensions = array<i32: 0>} : vector<32x128xi32>
    %c16_i32 = arith.constant 16 : i32
    %c0_i32 = arith.constant 0 : i32
    %2 = arith.cmpi eq, %c16_i32, %c0_i32 : i32
    %c1_i32 = arith.constant 1 : i32
    %3 = arith.select %2, %c1_i32, %c16_i32 : i32
    %4 = vector.broadcast %3 : i32 to vector<32x128xi32>
    %5 = arith.remsi %1, %4 : vector<32x128xi32>
    %c0_i32_1 = arith.constant 0 : i32
    %6 = vector.broadcast %c0_i32_1 : i32 to vector<32x128xi32>
    %7 = arith.cmpi ne, %5, %6 : vector<32x128xi32>
    %c0_i32_2 = arith.constant 0 : i32
    %8 = vector.broadcast %c0_i32_2 : i32 to vector<32x128xi32>
    %9 = arith.cmpi slt, %5, %8 : vector<32x128xi32>
    %c0_i32_3 = arith.constant 0 : i32
    %10 = arith.cmpi slt, %3, %c0_i32_3 : i32
    %11 = vector.broadcast %10 : i1 to vector<32x128xi1>
    %12 = vector.broadcast %11 : vector<32x128xi1> to vector<32x128xi1>
    %13 = arith.xori %9, %12 : vector<32x128xi1>
    %14 = arith.andi %13, %7 : vector<32x128xi1>
    %15 = vector.broadcast %3 : i32 to vector<32x128xi32>
    %16 = arith.addi %5, %15 : vector<32x128xi32>
    %17 = arith.select %14, %16, %5 : vector<32x128xi1>, vector<32x128xi32>
    %c0_i32_4 = arith.constant 0 : i32
    %18 = vector.broadcast %c0_i32_4 : i32 to vector<32x128xi32>
    %19 = arith.cmpi ne, %17, %18 : vector<32x128xi32>
    %20 = arith.extui %19 : vector<32x128xi1> to vector<32x128xi32>
    %21 = arith.sitofp %20 : vector<32x128xi32> to vector<32x128xf32>
    %c15_i32 = arith.constant 15 : i32
    %22 = vector.broadcast %c15_i32 : i32 to vector<32x128xi32>
    %23 = arith.cmpi ne, %17, %22 : vector<32x128xi32>
    %24 = arith.extui %23 : vector<32x128xi1> to vector<32x128xi32>
    %25 = arith.sitofp %24 : vector<32x128xi32> to vector<32x128xf32>
    %c0_5 = arith.constant 0 : index
    %c0_6 = arith.constant 0 : index
    %26 = vector.load %arg4[%c0_5, %c0_6] : memref<1x128xf32, #tpu.memory_space<vmem>>, vector<1x128xf32>
    %c0_7 = arith.constant 0 : index
    %c0_8 = arith.constant 0 : index
    %27 = vector.load %arg5[%c0_7, %c0_8] : memref<1x128xf32, #tpu.memory_space<vmem>>, vector<1x128xf32>
    %c0_9 = arith.constant 0 : index
    %c0_10 = arith.constant 0 : index
    %28 = vector.load %arg3[%c0_9, %c0_10] : memref<128x128xf32, #tpu.memory_space<vmem>>, vector<128x128xf32>
    %c1_i32_11 = arith.constant 1 : i32
    %29 = tpu.dynamic_rotate %0 by %c1_i32_11 dim 0 : vector<32x128xf32>, i32 -> vector<32x128xf32>
    %30 = arith.mulf %29, %21 : vector<32x128xf32>
    %c31_i32 = arith.constant 31 : i32
    %31 = tpu.dynamic_rotate %0 by %c31_i32 dim 0 : vector<32x128xf32>, i32 -> vector<32x128xf32>
    %32 = arith.mulf %31, %25 : vector<32x128xf32>
    %c0_12 = arith.constant 0 : index
    %c0_13 = arith.constant 0 : index
    %c0_14 = arith.constant 0 : index
    %33 = vector.load %arg2[%c0_12, %c0_13, %c0_14] : memref<3x128x128xf32, #tpu.memory_space<vmem>>, vector<1x128x128xf32>
    %34 = vector.shape_cast %33 : vector<1x128x128xf32> to vector<128x128xf32>
    %cst = arith.constant dense<0.000000e+00> : vector<32x128xf32>
    %35 = tpu.matmul %30, %34, %cst {dimension_numbers = #tpu.dot_dimension_numbers<[1], [0], [0], [1], [0, 0, 1, 1], [], []>} : vector<32x128xf32>, vector<128x128xf32>, vector<32x128xf32> -> vector<32x128xf32>
    %c1 = arith.constant 1 : index
    %c0_15 = arith.constant 0 : index
    %c0_16 = arith.constant 0 : index
    %36 = vector.load %arg2[%c1, %c0_15, %c0_16] : memref<3x128x128xf32, #tpu.memory_space<vmem>>, vector<1x128x128xf32>
    %37 = vector.shape_cast %36 : vector<1x128x128xf32> to vector<128x128xf32>
    %cst_17 = arith.constant dense<0.000000e+00> : vector<32x128xf32>
    %38 = tpu.matmul %0, %37, %cst_17 {dimension_numbers = #tpu.dot_dimension_numbers<[1], [0], [0], [1], [0, 0, 1, 1], [], []>} : vector<32x128xf32>, vector<128x128xf32>, vector<32x128xf32> -> vector<32x128xf32>
    %39 = arith.addf %35, %38 : vector<32x128xf32>
    %c2 = arith.constant 2 : index
    %c0_18 = arith.constant 0 : index
    %c0_19 = arith.constant 0 : index
    %40 = vector.load %arg2[%c2, %c0_18, %c0_19] : memref<3x128x128xf32, #tpu.memory_space<vmem>>, vector<1x128x128xf32>
    %41 = vector.shape_cast %40 : vector<1x128x128xf32> to vector<128x128xf32>
    %cst_20 = arith.constant dense<0.000000e+00> : vector<32x128xf32>
    %42 = tpu.matmul %32, %41, %cst_20 {dimension_numbers = #tpu.dot_dimension_numbers<[1], [0], [0], [1], [0, 0, 1, 1], [], []>} : vector<32x128xf32>, vector<128x128xf32>, vector<32x128xf32> -> vector<32x128xf32>
    %43 = arith.addf %39, %42 : vector<32x128xf32>
    %cst_21 = arith.constant dense<0.000000e+00> : vector<128xf32>
    %44 = vector.multi_reduction <add>, %43, %cst_21 [0] : vector<32x128xf32> to vector<128xf32>
    %45 = vector.shape_cast %44 : vector<128xf32> to vector<1x128xf32>
    %46 = arith.mulf %43, %43 : vector<32x128xf32>
    %cst_22 = arith.constant dense<0.000000e+00> : vector<128xf32>
    %47 = vector.multi_reduction <add>, %46, %cst_22 [0] : vector<32x128xf32> to vector<128xf32>
    %48 = vector.shape_cast %47 : vector<128xf32> to vector<1x128xf32>
    %cst_23 = arith.constant dense<0.000000e+00> : vector<1x128xf32>
    %49 = tpu.matmul %45, %28, %cst_23 {dimension_numbers = #tpu.dot_dimension_numbers<[1], [0], [0], [1], [0, 0, 1, 1], [], []>} : vector<1x128xf32>, vector<128x128xf32>, vector<1x128xf32> -> vector<1x128xf32>
    %cst_24 = arith.constant dense<0.000000e+00> : vector<1x128xf32>
    %50 = tpu.matmul %48, %28, %cst_24 {dimension_numbers = #tpu.dot_dimension_numbers<[1], [0], [0], [1], [0, 0, 1, 1], [], []>} : vector<1x128xf32>, vector<128x128xf32>, vector<1x128xf32> -> vector<1x128xf32>
    %51 = arith.mulf %49, %49 : vector<1x128xf32>
    %52 = arith.subf %50, %51 : vector<1x128xf32>
    %cst_25 = arith.constant 9.99999974E-6 : f32
    %53 = vector.broadcast %cst_25 : f32 to vector<1x128xf32>
    %54 = arith.addf %52, %53 : vector<1x128xf32>
    %55 = math.rsqrt %54 : vector<1x128xf32>
    %56 = arith.mulf %26, %55 : vector<1x128xf32>
    %57 = arith.mulf %49, %56 : vector<1x128xf32>
    %58 = arith.subf %27, %57 : vector<1x128xf32>
    %59 = vector.broadcast %56 : vector<1x128xf32> to vector<32x128xf32>
    %60 = arith.mulf %43, %59 : vector<32x128xf32>
    %61 = vector.broadcast %58 : vector<1x128xf32> to vector<32x128xf32>
    %62 = arith.addf %60, %61 : vector<32x128xf32>
    %cst_26 = arith.constant 0.000000e+00 : f32
    %63 = vector.broadcast %cst_26 : f32 to vector<32x128xf32>
    %64 = arith.maximumf %62, %63 : vector<32x128xf32>
    %65 = arith.addf %0, %64 : vector<32x128xf32>
    %c1_i32_27 = arith.constant 1 : i32
    %66 = tpu.dynamic_rotate %65 by %c1_i32_27 dim 0 : vector<32x128xf32>, i32 -> vector<32x128xf32>
    %67 = arith.mulf %66, %21 : vector<32x128xf32>
    %c31_i32_28 = arith.constant 31 : i32
    %68 = tpu.dynamic_rotate %65 by %c31_i32_28 dim 0 : vector<32x128xf32>, i32 -> vector<32x128xf32>
    %69 = arith.mulf %68, %25 : vector<32x128xf32>
    %c0_29 = arith.constant 0 : index
    %c0_30 = arith.constant 0 : index
    %c0_31 = arith.constant 0 : index
    %70 = vector.load %arg2[%c0_29, %c0_30, %c0_31] : memref<3x128x128xf32, #tpu.memory_space<vmem>>, vector<1x128x128xf32>
    %71 = vector.shape_cast %70 : vector<1x128x128xf32> to vector<128x128xf32>
    %cst_32 = arith.constant dense<0.000000e+00> : vector<32x128xf32>
    %72 = tpu.matmul %67, %71, %cst_32 {dimension_numbers = #tpu.dot_dimension_numbers<[1], [0], [0], [1], [0, 0, 1, 1], [], []>} : vector<32x128xf32>, vector<128x128xf32>, vector<32x128xf32> -> vector<32x128xf32>
    %c1_33 = arith.constant 1 : index
    %c0_34 = arith.constant 0 : index
    %c0_35 = arith.constant 0 : index
    %73 = vector.load %arg2[%c1_33, %c0_34, %c0_35] : memref<3x128x128xf32, #tpu.memory_space<vmem>>, vector<1x128x128xf32>
    %74 = vector.shape_cast %73 : vector<1x128x128xf32> to vector<128x128xf32>
    %cst_36 = arith.constant dense<0.000000e+00> : vector<32x128xf32>
    %75 = tpu.matmul %65, %74, %cst_36 {dimension_numbers = #tpu.dot_dimension_numbers<[1], [0], [0], [1], [0, 0, 1, 1], [], []>} : vector<32x128xf32>, vector<128x128xf32>, vector<32x128xf32> -> vector<32x128xf32>
    %76 = arith.addf %72, %75 : vector<32x128xf32>
    %c2_37 = arith.constant 2 : index
    %c0_38 = arith.constant 0 : index
    %c0_39 = arith.constant 0 : index
    %77 = vector.load %arg2[%c2_37, %c0_38, %c0_39] : memref<3x128x128xf32, #tpu.memory_space<vmem>>, vector<1x128x128xf32>
    %78 = vector.shape_cast %77 : vector<1x128x128xf32> to vector<128x128xf32>
    %cst_40 = arith.constant dense<0.000000e+00> : vector<32x128xf32>
    %79 = tpu.matmul %69, %78, %cst_40 {dimension_numbers = #tpu.dot_dimension_numbers<[1], [0], [0], [1], [0, 0, 1, 1], [], []>} : vector<32x128xf32>, vector<128x128xf32>, vector<32x128xf32> -> vector<32x128xf32>
    %80 = arith.addf %76, %79 : vector<32x128xf32>
    %cst_41 = arith.constant dense<0.000000e+00> : vector<128xf32>
    %81 = vector.multi_reduction <add>, %80, %cst_41 [0] : vector<32x128xf32> to vector<128xf32>
    %82 = vector.shape_cast %81 : vector<128xf32> to vector<1x128xf32>
    %83 = arith.mulf %80, %80 : vector<32x128xf32>
    %cst_42 = arith.constant dense<0.000000e+00> : vector<128xf32>
    %84 = vector.multi_reduction <add>, %83, %cst_42 [0] : vector<32x128xf32> to vector<128xf32>
    %85 = vector.shape_cast %84 : vector<128xf32> to vector<1x128xf32>
    %cst_43 = arith.constant dense<0.000000e+00> : vector<1x128xf32>
    %86 = tpu.matmul %82, %28, %cst_43 {dimension_numbers = #tpu.dot_dimension_numbers<[1], [0], [0], [1], [0, 0, 1, 1], [], []>} : vector<1x128xf32>, vector<128x128xf32>, vector<1x128xf32> -> vector<1x128xf32>
    %cst_44 = arith.constant dense<0.000000e+00> : vector<1x128xf32>
    %87 = tpu.matmul %85, %28, %cst_44 {dimension_numbers = #tpu.dot_dimension_numbers<[1], [0], [0], [1], [0, 0, 1, 1], [], []>} : vector<1x128xf32>, vector<128x128xf32>, vector<1x128xf32> -> vector<1x128xf32>
    %88 = arith.mulf %86, %86 : vector<1x128xf32>
    %89 = arith.subf %87, %88 : vector<1x128xf32>
    %cst_45 = arith.constant 9.99999974E-6 : f32
    %90 = vector.broadcast %cst_45 : f32 to vector<1x128xf32>
    %91 = arith.addf %89, %90 : vector<1x128xf32>
    %92 = math.rsqrt %91 : vector<1x128xf32>
    %93 = arith.mulf %26, %92 : vector<1x128xf32>
    %94 = arith.mulf %86, %93 : vector<1x128xf32>
    %95 = arith.subf %27, %94 : vector<1x128xf32>
    %96 = vector.broadcast %93 : vector<1x128xf32> to vector<32x128xf32>
    %97 = arith.mulf %80, %96 : vector<32x128xf32>
    %98 = vector.broadcast %95 : vector<1x128xf32> to vector<32x128xf32>
    %99 = arith.addf %97, %98 : vector<32x128xf32>
    %cst_46 = arith.constant 0.000000e+00 : f32
    %100 = vector.broadcast %cst_46 : f32 to vector<32x128xf32>
    %101 = arith.maximumf %99, %100 : vector<32x128xf32>
    %102 = arith.addf %0, %101 : vector<32x128xf32>
    %c1_i32_47 = arith.constant 1 : i32
    %103 = tpu.dynamic_rotate %102 by %c1_i32_47 dim 0 : vector<32x128xf32>, i32 -> vector<32x128xf32>
    %104 = arith.mulf %103, %21 : vector<32x128xf32>
    %c31_i32_48 = arith.constant 31 : i32
    %105 = tpu.dynamic_rotate %102 by %c31_i32_48 dim 0 : vector<32x128xf32>, i32 -> vector<32x128xf32>
    %106 = arith.mulf %105, %25 : vector<32x128xf32>
    %c0_49 = arith.constant 0 : index
    %c0_50 = arith.constant 0 : index
    %c0_51 = arith.constant 0 : index
    %107 = vector.load %arg2[%c0_49, %c0_50, %c0_51] : memref<3x128x128xf32, #tpu.memory_space<vmem>>, vector<1x128x128xf32>
    %108 = vector.shape_cast %107 : vector<1x128x128xf32> to vector<128x128xf32>
    %cst_52 = arith.constant dense<0.000000e+00> : vector<32x128xf32>
    %109 = tpu.matmul %104, %108, %cst_52 {dimension_numbers = #tpu.dot_dimension_numbers<[1], [0], [0], [1], [0, 0, 1, 1], [], []>} : vector<32x128xf32>, vector<128x128xf32>, vector<32x128xf32> -> vector<32x128xf32>
    %c1_53 = arith.constant 1 : index
    %c0_54 = arith.constant 0 : index
    %c0_55 = arith.constant 0 : index
    %110 = vector.load %arg2[%c1_53, %c0_54, %c0_55] : memref<3x128x128xf32, #tpu.memory_space<vmem>>, vector<1x128x128xf32>
    %111 = vector.shape_cast %110 : vector<1x128x128xf32> to vector<128x128xf32>
    %cst_56 = arith.constant dense<0.000000e+00> : vector<32x128xf32>
    %112 = tpu.matmul %102, %111, %cst_56 {dimension_numbers = #tpu.dot_dimension_numbers<[1], [0], [0], [1], [0, 0, 1, 1], [], []>} : vector<32x128xf32>, vector<128x128xf32>, vector<32x128xf32> -> vector<32x128xf32>
    %113 = arith.addf %109, %112 : vector<32x128xf32>
    %c2_57 = arith.constant 2 : index
    %c0_58 = arith.constant 0 : index
    %c0_59 = arith.constant 0 : index
    %114 = vector.load %arg2[%c2_57, %c0_58, %c0_59] : memref<3x128x128xf32, #tpu.memory_space<vmem>>, vector<1x128x128xf32>
    %115 = vector.shape_cast %114 : vector<1x128x128xf32> to vector<128x128xf32>
    %cst_60 = arith.constant dense<0.000000e+00> : vector<32x128xf32>
    %116 = tpu.matmul %106, %115, %cst_60 {dimension_numbers = #tpu.dot_dimension_numbers<[1], [0], [0], [1], [0, 0, 1, 1], [], []>} : vector<32x128xf32>, vector<128x128xf32>, vector<32x128xf32> -> vector<32x128xf32>
    %117 = arith.addf %113, %116 : vector<32x128xf32>
    %cst_61 = arith.constant dense<0.000000e+00> : vector<128xf32>
    %118 = vector.multi_reduction <add>, %117, %cst_61 [0] : vector<32x128xf32> to vector<128xf32>
    %119 = vector.shape_cast %118 : vector<128xf32> to vector<1x128xf32>
    %120 = arith.mulf %117, %117 : vector<32x128xf32>
    %cst_62 = arith.constant dense<0.000000e+00> : vector<128xf32>
    %121 = vector.multi_reduction <add>, %120, %cst_62 [0] : vector<32x128xf32> to vector<128xf32>
    %122 = vector.shape_cast %121 : vector<128xf32> to vector<1x128xf32>
    %cst_63 = arith.constant dense<0.000000e+00> : vector<1x128xf32>
    %123 = tpu.matmul %119, %28, %cst_63 {dimension_numbers = #tpu.dot_dimension_numbers<[1], [0], [0], [1], [0, 0, 1, 1], [], []>} : vector<1x128xf32>, vector<128x128xf32>, vector<1x128xf32> -> vector<1x128xf32>
    %cst_64 = arith.constant dense<0.000000e+00> : vector<1x128xf32>
    %124 = tpu.matmul %122, %28, %cst_64 {dimension_numbers = #tpu.dot_dimension_numbers<[1], [0], [0], [1], [0, 0, 1, 1], [], []>} : vector<1x128xf32>, vector<128x128xf32>, vector<1x128xf32> -> vector<1x128xf32>
    %125 = arith.mulf %123, %123 : vector<1x128xf32>
    %126 = arith.subf %124, %125 : vector<1x128xf32>
    %cst_65 = arith.constant 9.99999974E-6 : f32
    %127 = vector.broadcast %cst_65 : f32 to vector<1x128xf32>
    %128 = arith.addf %126, %127 : vector<1x128xf32>
    %129 = math.rsqrt %128 : vector<1x128xf32>
    %130 = arith.mulf %26, %129 : vector<1x128xf32>
    %131 = arith.mulf %123, %130 : vector<1x128xf32>
    %132 = arith.subf %27, %131 : vector<1x128xf32>
    %133 = vector.broadcast %130 : vector<1x128xf32> to vector<32x128xf32>
    %134 = arith.mulf %117, %133 : vector<32x128xf32>
    %135 = vector.broadcast %132 : vector<1x128xf32> to vector<32x128xf32>
    %136 = arith.addf %134, %135 : vector<32x128xf32>
    %cst_66 = arith.constant 0.000000e+00 : f32
    %137 = vector.broadcast %cst_66 : f32 to vector<32x128xf32>
    %138 = arith.maximumf %136, %137 : vector<32x128xf32>
    %c0_67 = arith.constant 0 : index
    %c0_68 = arith.constant 0 : index
    %139 = vector.load %arg6[%c0_67, %c0_68] : memref<32x128xf32, #tpu.memory_space<vmem>>, vector<32x128xf32>
    tpu.vector_store %arg6[%c0_67, %c0_68], %138 {strides = array<i32>} : memref<32x128xf32, #tpu.memory_space<vmem>>, vector<32x128xf32>,
    return
  }
  func.func @transform_0(%arg0: i32) -> (i32, i32) {
    %c0_i32 = arith.constant 0 : i32
    %c0_i32_0 = arith.constant 0 : i32
    %c0_i32_1 = arith.constant 0 : i32
    return %c0_i32, %c0_i32_0 : i32, i32
  }
  func.func @transform_1(%arg0: i32) -> (i32, i32, i32) {
    %c0_i32 = arith.constant 0 : i32
    %c0_i32_0 = arith.constant 0 : i32
    %c0_i32_1 = arith.constant 0 : i32
    %c0_i32_2 = arith.constant 0 : i32
    return %c0_i32, %c0_i32_0, %c0_i32_1 : i32, i32, i32
  }
  func.func @transform_2(%arg0: i32) -> (i32, i32) {
    %c0_i32 = arith.constant 0 : i32
    %c0_i32_0 = arith.constant 0 : i32
    %c0_i32_1 = arith.constant 0 : i32
    return %c0_i32, %c0_i32_0 : i32, i32
  }
  func.func @transform_3(%arg0: i32) -> (i32, i32) {
    %c0_i32 = arith.constant 0 : i32
    %c0_i32_0 = arith.constant 0 : i32
    %c0_i32_1 = arith.constant 0 : i32
    return %c0_i32, %c0_i32_0 : i32, i32
  }
  func.func @transform_4(%arg0: i32) -> (i32, i32) {
    %c0_i32 = arith.constant 0 : i32
    %c0_i32_0 = arith.constant 0 : i32
    %c0_i32_1 = arith.constant 0 : i32
    return %c0_i32, %c0_i32_0 : i32, i32
  }
  func.func @transform_5(%arg0: i32) -> (i32, i32) {
    %c0_i32 = arith.constant 0 : i32
    %c0_i32_0 = arith.constant 0 : i32
    %c0_i32_1 = arith.constant 0 : i32
    return %c0_i32, %c0_i32_0 : i32, i32
  }
}

</mosaic_0001>

<llo_original>
// kernel: tpu_custom_call.1
$region0: #{tpu_custom_call.1}
  #allocation0 [shape = 'u32[]', space=smem, size = 0x4, offset = 0x4, fixed_abs, tag = 'smem constant byte address 0x4 - core index']
  #allocation1 [shape = 'u32[144,128]{1,0:T(1,128)}', space=vmem, size = 0x12000, scoped, tag = 'internal scratch']
  %s0 = inlined_call_operand.hbm [shape: f32[32,128], index: 0, kind: input, shape index: {}]
  %s1 = inlined_call_operand.hbm [shape: f32[3,128,128], index: 1, kind: input, shape index: {}]
  %s2 = inlined_call_operand.hbm [shape: f32[128,128], index: 2, kind: input, shape index: {}]
  %s3 = inlined_call_operand.vmem [shape: f32[1,128], index: 3, kind: input, shape index: {}]
  %s4 = inlined_call_operand.vmem [shape: f32[1,128], index: 4, kind: input, shape index: {}]
  %s5 = inlined_call_operand.hbm [shape: f32[32,128], index: 5, kind: output, shape index: {}]
  %s6 = sld [smem:[#allocation0]]
  $region42: #{tpu_custom_call.1} parent=0
    _
  %s8 = ssub.s32 1, %s6
  %s9 = scalar_select 0, %s8, %s6
  $region1: #{tpu_custom_call.1} parent=0
    #allocation2 [shape = 'u8[16384]{0}', space=vmem, size = 0x4000, scoped, tag = 'input window, operand 0, single buffered']
    #allocation3 [shape = 's32[1]{0}', space=sflag, size = 0x4, scoped, tag = 'scoped memory for tpu_custom_call.1']
    #allocation4 [shape = 's32[1]{0}', space=sflag, size = 0x4, scoped, tag = 'scoped memory for tpu_custom_call.1']
    #allocation5 [shape = 'u8[196608]{0}', space=vmem, size = 0x30000, scoped, tag = 'input window, operand 1, single buffered']
    #allocation6 [shape = 's32[1]{0}', space=sflag, size = 0x4, scoped, tag = 'scoped memory for tpu_custom_call.1']
    #allocation7 [shape = 'u8[65536]{0}', space=vmem, size = 0x10000, scoped, tag = 'input window, operand 2, single buffered']
    #allocation8 [shape = 'u8[16384]{0}', space=vmem, size = 0x4000, scoped, tag = 'output window, operand 0, single buffered']
    %10 = vsyncpa [#allocation3], 0
    %11 = vsyncpa [#allocation6], 0
    %12 = vsyncpa [#allocation4], 0
    // Predicated region
    $region2: #{tpu_custom_call.1} parent=1 // pred_check
      _
    $region3: #{tpu_custom_call.1} parent=1 // pred_check_branch
      %14 = sbr.rel (0) target = $region5
    $region4: #{tpu_custom_call.1} parent=1 // pred_region
      %s16 = ssub.s32 512, 512
      %17 = vsyncadd [#allocation3], %s16
      %s18 = sshll.u32 [#allocation2], 4
      %s19 = int_to_ptr.vmem [resolvable:$true] %s18
      %24 = dma.hbm_to_vmem [thread:$0]  %s0, 512, %s19, [#allocation3], 128, 128, 8
    $region5: #{tpu_custom_call.1} parent=1 // pred_fallthru
      _
    // Predicated region
    $region6: #{tpu_custom_call.1} parent=1 // pred_check
      _
    $region7: #{tpu_custom_call.1} parent=1 // pred_check_branch
      %26 = sbr.rel (0) target = $region9
    $region8: #{tpu_custom_call.1} parent=1 // pred_region
      %s28 = ssub.s32 6144, 6144
      %29 = vsyncadd [#allocation6], %s28
      %s30 = sshll.u32 [#allocation5], 4
      %s31 = int_to_ptr.vmem [resolvable:$true] %s30
      %36 = dma.hbm_to_vmem [thread:$0]  %s1, 6144, %s31, [#allocation6], 128, 128, 8
    $region9: #{tpu_custom_call.1} parent=1 // pred_fallthru
      _
    // Predicated region
    $region10: #{tpu_custom_call.1} parent=1 // pred_check
      _
    $region11: #{tpu_custom_call.1} parent=1 // pred_check_branch
      %38 = sbr.rel (0) target = $region13
    $region12: #{tpu_custom_call.1} parent=1 // pred_region
      %s40 = ssub.s32 2048, 2048
      %41 = vsyncadd [#allocation6], %s40
      %s42 = sshll.u32 [#allocation7], 4
      %s43 = int_to_ptr.vmem [resolvable:$true] %s42
      %48 = dma.hbm_to_vmem [thread:$0]  %s2, 2048, %s43, [#allocation6], 128, 128, 8
    $region13: #{tpu_custom_call.1} parent=1 // pred_fallthru
      _
    // Predicated region
    $region14: #{tpu_custom_call.1} parent=1 // pred_check
      _
    $region15: #{tpu_custom_call.1} parent=1 // pred_check_branch
      %50 = sbr.rel (0) target = $region17
    $region16: #{tpu_custom_call.1} parent=1 // pred_region
      _
    $region17: #{tpu_custom_call.1} parent=1 // pred_fallthru
      _
    // Predicated region
    $region18: #{tpu_custom_call.1} parent=1 // pred_check
      _
    $region19: #{tpu_custom_call.1} parent=1 // pred_check_branch
      %52 = sbr.rel (0) target = $region21
    $region20: #{tpu_custom_call.1} parent=1 // pred_region
      _
    $region21: #{tpu_custom_call.1} parent=1 // pred_fallthru
      _
    // Predicated region
    $region22: #{tpu_custom_call.1} parent=1 // pred_check
      _
    $region23: #{tpu_custom_call.1} parent=1 // pred_check_branch
      %54 = sbr.rel (0) target = $region25
    $region24: #{tpu_custom_call.1} parent=1 // pred_region
      %55 = dma.done [#allocation3], 512
    $region25: #{tpu_custom_call.1} parent=1 // pred_fallthru
      _
    // Predicated region
    $region26: #{tpu_custom_call.1} parent=1 // pred_check
      _
    $region27: #{tpu_custom_call.1} parent=1 // pred_check_branch
      %57 = sbr.rel (0) target = $region29
    $region28: #{tpu_custom_call.1} parent=1 // pred_region
      %58 = dma.done [#allocation6], 6144
    $region29: #{tpu_custom_call.1} parent=1 // pred_fallthru
      _
    // Predicated region
    $region30: #{tpu_custom_call.1} parent=1 // pred_check
      _
    $region31: #{tpu_custom_call.1} parent=1 // pred_check_branch
      %60 = sbr.rel (0) target = $region33
    $region32: #{tpu_custom_call.1} parent=1 // pred_region
      %61 = dma.done [#allocation6], 2048
    $region33: #{tpu_custom_call.1} parent=1 // pred_fallthru
      _
    %v62 = vld [vmem:[#allocation2] sm:$0xff]
    %v63 = vld [vmem:[#allocation2 + $0x8] sm:$0xff]
    %v64 = vld [vmem:[#allocation2 + $0x10] sm:$0xff]
    %v65 = vld [vmem:[#allocation2 + $0x18] sm:$0xff]
    %v66 = vlaneseq
    %v67 = vshrl.u32 %v66, 7
    %v68 = vadd.s32 %v67, 8
    %v69 = vadd.s32 %v67, 16
    %v70 = vadd.s32 %v67, 24
    %vm71 = vcmp.lt.s32.totalorder %v67, 0
    %v72 = vsub.s32 0, %v67
    %v73 = vsel %vm71, %v72, %v67
    %v74 = vshrl.u32 %v73, 4
    %v75 = vand.u32 %v73, 15
    %v76 = vsub.s32 0, %v75
    %v77 = vsel %vm71, %v76, %v75
    %vm78 = vcmp.lt.s32.totalorder %v68, 0
    %v79 = vsub.s32 0, %v68
    %v80 = vsel %vm78, %v79, %v68
    %v81 = vshrl.u32 %v80, 4
    %v82 = vand.u32 %v80, 15
    %v83 = vsub.s32 0, %v82
    %v84 = vsel %vm78, %v83, %v82
    %vm85 = vcmp.lt.s32.totalorder %v69, 0
    %v86 = vsub.s32 0, %v69
    %v87 = vsel %vm85, %v86, %v69
    %v88 = vshrl.u32 %v87, 4
    %v89 = vand.u32 %v87, 15
    %v90 = vsub.s32 0, %v89
    %v91 = vsel %vm85, %v90, %v89
    %vm92 = vcmp.lt.s32.totalorder %v70, 0
    %v93 = vsub.s32 0, %v70
    %v94 = vsel %vm92, %v93, %v70
    %v95 = vshrl.u32 %v94, 4
    %v96 = vand.u32 %v94, 15
    %v97 = vsub.s32 0, %v96
    %v98 = vsel %vm92, %v97, %v96
    %vm99 = vcmp.ne.s32.totalorder %v77, 0
    %vm100 = vcmp.ne.s32.totalorder %v84, 0
    %vm101 = vcmp.ne.s32.totalorder %v91, 0
    %vm102 = vcmp.ne.s32.totalorder %v98, 0
    %vm103 = vcmp.lt.s32.totalorder %v77, 0
    %vm104 = vcmp.lt.s32.totalorder %v84, 0
    %vm105 = vcmp.lt.s32.totalorder %v91, 0
    %vm106 = vcmp.lt.s32.totalorder %v98, 0
    %vm107 = vmand %vm103, %vm99
    %vm108 = vmand %vm104, %vm100
    %vm109 = vmand %vm105, %vm101
    %vm110 = vmand %vm106, %vm102
    %v111 = vadd.s32 %v77, 16
    %v112 = vadd.s32 %v84, 16
    %v113 = vadd.s32 %v91, 16
    %v114 = vadd.s32 %v98, 16
    %v115 = vsel %vm107, %v111, %v77
    %v116 = vsel %vm108, %v112, %v84
    %v117 = vsel %vm109, %v113, %v91
    %v118 = vsel %vm110, %v114, %v98
    %vm119 = vcmp.ne.s32.totalorder %v115, 0
    %vm120 = vcmp.ne.s32.totalorder %v116, 0
    %vm121 = vcmp.ne.s32.totalorder %v117, 0
    %vm122 = vcmp.ne.s32.totalorder %v118, 0
    %v123 = vsel %vm119, 1, 0
    %v124 = vsel %vm120, 1, 0
    %v125 = vsel %vm121, 1, 0
    %v126 = vsel %vm122, 1, 0
    %v127 = vcvt.s32.f32 %v123
    %v128 = vcvt.s32.f32 %v124
    %v129 = vcvt.s32.f32 %v125
    %v130 = vcvt.s32.f32 %v126
    %vm131 = vcmp.ne.s32.totalorder %v115, 15
    %vm132 = vcmp.ne.s32.totalorder %v116, 15
    %vm133 = vcmp.ne.s32.totalorder %v117, 15
    %vm134 = vcmp.ne.s32.totalorder %v118, 15
    %v135 = vsel %vm131, 1, 0
    %v136 = vsel %vm132, 1, 0
    %v137 = vsel %vm133, 1, 0
    %v138 = vsel %vm134, 1, 0
    %v139 = vcvt.s32.f32 %v135
    %v140 = vcvt.s32.f32 %v136
    %v141 = vcvt.s32.f32 %v137
    %v142 = vcvt.s32.f32 %v138
    %v143 = vld [vmem:[%s3] sm:$0x1]
    %v144 = vld [vmem:[%s4] sm:$0x1]
    %v145 = vld [vmem:[#allocation7] sm:$0xff]
    %v146 = vld [vmem:[#allocation7 + $0x8] sm:$0xff]
    %v147 = vld [vmem:[#allocation7 + $0x10] sm:$0xff]
    %v148 = vld [vmem:[#allocation7 + $0x18] sm:$0xff]
    %v149 = vld [vmem:[#allocation7 + $0x20] sm:$0xff]
    %v150 = vld [vmem:[#allocation7 + $0x28] sm:$0xff]
    %v151 = vld [vmem:[#allocation7 + $0x30] sm:$0xff]
    %v152 = vld [vmem:[#allocation7 + $0x38] sm:$0xff]
    %v153 = vld [vmem:[#allocation7 + $0x40] sm:$0xff]
    %v154 = vld [vmem:[#allocation7 + $0x48] sm:$0xff]
    %v155 = vld [vmem:[#allocation7 + $0x50] sm:$0xff]
    %v156 = vld [vmem:[#allocation7 + $0x58] sm:$0xff]
    %v157 = vld [vmem:[#allocation7 + $0x60] sm:$0xff]
    %v158 = vld [vmem:[#allocation7 + $0x68] sm:$0xff]
    %v159 = vld [vmem:[#allocation7 + $0x70] sm:$0xff]
    %v160 = vld [vmem:[#allocation7 + $0x78] sm:$0xff]
    %v161 = vrot.slane %v62, 7
    %v162 = vrot.slane %v63, 7
    %v163 = vrot.slane %v64, 7
    %v164 = vrot.slane %v65, 7
    %vm165 = vcmp.lt.s32.totalorder %v67, 1
    %v166 = vsel %vm165, %v163, %v164
    %v167 = vsel %vm165, %v162, %v163
    %v168 = vsel %vm165, %v161, %v162
    %v169 = vsel %vm165, %v164, %v161
    %v170 = vmul.f32 %v169, %v127
    %v171 = vmul.f32 %v168, %v128
    %v172 = vmul.f32 %v167, %v129
    %v173 = vmul.f32 %v166, %v130
    %v174 = vrot.slane %v62, 1
    %v175 = vrot.slane %v63, 1
    %v176 = vrot.slane %v64, 1
    %v177 = vrot.slane %v65, 1
    %vm178 = vcmp.lt.s32.totalorder %v67, 7
    %v179 = vsel %vm178, %v176, %v177
    %v180 = vsel %vm178, %v175, %v176
    %v181 = vsel %vm178, %v174, %v175
    %v182 = vsel %vm178, %v177, %v174
    %v183 = vmul.f32 %v181, %v139
    %v184 = vmul.f32 %v180, %v140
    %v185 = vmul.f32 %v179, %v141
    %v186 = vmul.f32 %v182, %v142
    %v187 = vld [vmem:[#allocation5] sm:$0xff]
    %v188 = vld [vmem:[#allocation5 + $0x8] sm:$0xff]
    %v189 = vld [vmem:[#allocation5 + $0x10] sm:$0xff]
    %v190 = vld [vmem:[#allocation5 + $0x18] sm:$0xff]
    %v191 = vld [vmem:[#allocation5 + $0x20] sm:$0xff]
    %v192 = vld [vmem:[#allocation5 + $0x28] sm:$0xff]
    %v193 = vld [vmem:[#allocation5 + $0x30] sm:$0xff]
    %v194 = vld [vmem:[#allocation5 + $0x38] sm:$0xff]
    %v195 = vld [vmem:[#allocation5 + $0x40] sm:$0xff]
    %v196 = vld [vmem:[#allocation5 + $0x48] sm:$0xff]
    %v197 = vld [vmem:[#allocation5 + $0x50] sm:$0xff]
    %v198 = vld [vmem:[#allocation5 + $0x58] sm:$0xff]
    %v199 = vld [vmem:[#allocation5 + $0x60] sm:$0xff]
    %v200 = vld [vmem:[#allocation5 + $0x68] sm:$0xff]
    %v201 = vld [vmem:[#allocation5 + $0x70] sm:$0xff]
    %v202 = vld [vmem:[#allocation5 + $0x78] sm:$0xff]
    %s203 = scalar_lea.vmem [#allocation5], 128
    %v204 = vld [vmem:[%s203] sm:$0xff]
    %v205 = vld [vmem:[%s203 + $0x8] sm:$0xff]
    %v206 = vld [vmem:[%s203 + $0x10] sm:$0xff]
    %v207 = vld [vmem:[%s203 + $0x18] sm:$0xff]
    %v208 = vld [vmem:[%s203 + $0x20] sm:$0xff]
    %v209 = vld [vmem:[%s203 + $0x28] sm:$0xff]
    %v210 = vld [vmem:[%s203 + $0x30] sm:$0xff]
    %v211 = vld [vmem:[%s203 + $0x38] sm:$0xff]
    %v212 = vld [vmem:[%s203 + $0x40] sm:$0xff]
    %v213 = vld [vmem:[%s203 + $0x48] sm:$0xff]
    %v214 = vld [vmem:[%s203 + $0x50] sm:$0xff]
    %v215 = vld [vmem:[%s203 + $0x58] sm:$0xff]
    %v216 = vld [vmem:[%s203 + $0x60] sm:$0xff]
    %v217 = vld [vmem:[%s203 + $0x68] sm:$0xff]
    %v218 = vld [vmem:[%s203 + $0x70] sm:$0xff]
    %v219 = vld [vmem:[%s203 + $0x78] sm:$0xff]
    %220 = vmatprep.subr.mxu0 0.0
    %221 = vmatpush1.msra.mxu0 %v219
    %222 = vmatprep.subr.mxu0 0.0
    %223 = vmatpush1.msra.mxu0 %v218
    %224 = vmatprep.subr.mxu0 0.0
    %225 = vmatpush1.msra.mxu0 %v217
    %226 = vmatprep.subr.mxu0 0.0
    %227 = vmatpush1.msra.mxu0 %v216
    %228 = vmatprep.subr.mxu0 0.0
    %229 = vmatpush1.msra.mxu0 %v215
    %230 = vmatprep.subr.mxu0 0.0
    %231 = vmatpush1.msra.mxu0 %v214
    %232 = vmatprep.subr.mxu0 0.0
    %233 = vmatpush1.msra.mxu0 %v213
    %234 = vmatprep.subr.mxu0 0.0
    %235 = vmatpush1.msra.mxu0 %v212
    %236 = vmatprep.subr.mxu0 0.0
    %237 = vmatpush1.msra.mxu0 %v211
    %238 = vmatprep.subr.mxu0 0.0
    %239 = vmatpush1.msra.mxu0 %v210
    %240 = vmatprep.subr.mxu0 0.0
    %241 = vmatpush1.msra.mxu0 %v209
    %242 = vmatprep.subr.mxu0 0.0
    %243 = vmatpush1.msra.mxu0 %v208
    %244 = vmatprep.subr.mxu0 0.0
    %245 = vmatpush1.msra.mxu0 %v207
    %246 = vmatprep.subr.mxu0 0.0
    %247 = vmatpush1.msra.mxu0 %v206
    %248 = vmatprep.subr.mxu0 0.0
    %249 = vmatpush1.msra.mxu0 %v205
    %250 = vmatprep.subr.mxu0 0.0
    %251 = vmatpush1.msra.mxu0 %v204
    %252 = vmatprep.subr.mxu0 0.0
    %253 = vmatpush2.msra.mxu0 0.0
    %254 = vmatprep.subr.mxu0 0.0
    %255 = vmatpush2.msra.mxu0 0.0
    %256 = vmatprep.subr.mxu0 0.0
    %257 = vmatpush2.msra.mxu0 0.0
    %258 = vmatprep.subr.mxu0 0.0
    %259 = vmatpush2.msra.mxu0 0.0
    %260 = vmatprep.subr.mxu0 0.0
    %261 = vmatpush2.msra.mxu0 0.0
    %262 = vmatprep.subr.mxu0 0.0
    %263 = vmatpush2.msra.mxu0 0.0
    %264 = vmatprep.subr.mxu0 0.0
    %265 = vmatpush2.msra.mxu0 0.0
    %266 = vmatprep.subr.mxu0 0.0
    %267 = vmatpush2.msra.mxu0 0.0
    %268 = vmatprep.subr.mxu0 0.0
    %269 = vmatpush2.msra.mxu0 0.0
    %270 = vmatprep.subr.mxu0 0.0
    %271 = vmatpush2.msra.mxu0 0.0
    %272 = vmatprep.subr.mxu0 0.0
    %273 = vmatpush2.msra.mxu0 0.0
    %274 = vmatprep.subr.mxu0 0.0
    %275 = vmatpush2.msra.mxu0 0.0
    %276 = vmatprep.subr.mxu0 0.0
    %277 = vmatpush2.msra.mxu0 0.0
    %278 = vmatprep.subr.mxu0 0.0
    %279 = vmatpush2.msra.mxu0 0.0
    %280 = vmatprep.subr.mxu0 0.0
    %281 = vmatpush2.msra.mxu0 0.0
    %282 = vmatprep.subr.mxu0 0.0
    %283 = vmatpush2.msra.mxu0 0.0
    %284 = vmatprep.mubr.f32.mxu0 0.0
    %285 = vmatmul.mubr.f32.gmra.mxu0 %v62
    %v286 = vpop.f32.mrf.mxu0
    %v287 = vadd.f32 0.0, %v286
    %v288 = vpop.f32.mrf.mxu0
    %289 = vmatprep.mubr.f32.mxu0 0.0
    %290 = vmatmul.mubr.f32.gmra.mxu0 %v63
    %v291 = vpop.f32.mrf.mxu0
    %v292 = vadd.f32 0.0, %v291
    %v293 = vpop.f32.mrf.mxu0
    %294 = vmatprep.mubr.f32.mxu0 0.0
    %295 = vmatmul.mubr.f32.gmra.mxu0 %v64
    %v296 = vpop.f32.mrf.mxu0
    %v297 = vadd.f32 0.0, %v296
    %v298 = vpop.f32.mrf.mxu0
    %299 = vmatprep.mubr.f32.mxu0 0.0
    %300 = vmatmul.mubr.f32.gmra.mxu0 %v65
    %v301 = vpop.f32.mrf.mxu0
    %v302 = vadd.f32 0.0, %v301
    %v303 = vpop.f32.mrf.mxu0
    %304 = vdwg.mxu0
    %305 = vmatprep.subr.mxu0 0.0
    %306 = vmatpush1.msra.mxu0 %v202
    %307 = vmatprep.subr.mxu0 0.0
    %308 = vmatpush1.msra.mxu0 %v201
    %309 = vmatprep.subr.mxu0 0.0
    %310 = vmatpush1.msra.mxu0 %v200
    %311 = vmatprep.subr.mxu0 0.0
    %312 = vmatpush1.msra.mxu0 %v199
    %313 = vmatprep.subr.mxu0 0.0
    %314 = vmatpush1.msra.mxu0 %v198
    %315 = vmatprep.subr.mxu0 0.0
    %316 = vmatpush1.msra.mxu0 %v197
    %317 = vmatprep.subr.mxu0 0.0
    %318 = vmatpush1.msra.mxu0 %v196
    %319 = vmatprep.subr.mxu0 0.0
    %320 = vmatpush1.msra.mxu0 %v195
    %321 = vmatprep.subr.mxu0 0.0
    %322 = vmatpush1.msra.mxu0 %v194
    %323 = vmatprep.subr.mxu0 0.0
    %324 = vmatpush1.msra.mxu0 %v193
    %325 = vmatprep.subr.mxu0 0.0
    %326 = vmatpush1.msra.mxu0 %v192
    %327 = vmatprep.subr.mxu0 0.0
    %328 = vmatpush1.msra.mxu0 %v191
    %329 = vmatprep.subr.mxu0 0.0
    %330 = vmatpush1.msra.mxu0 %v190
    %331 = vmatprep.subr.mxu0 0.0
    %332 = vmatpush1.msra.mxu0 %v189
    %333 = vmatprep.subr.mxu0 0.0
    %334 = vmatpush1.msra.mxu0 %v188
    %335 = vmatprep.subr.mxu0 0.0
    %336 = vmatpush1.msra.mxu0 %v187
    %337 = vmatprep.subr.mxu0 0.0
    %338 = vmatpush2.msra.mxu0 0.0
    %339 = vmatprep.subr.mxu0 0.0
    %340 = vmatpush2.msra.mxu0 0.0
    %341 = vmatprep.subr.mxu0 0.0
    %342 = vmatpush2.msra.mxu0 0.0
    %343 = vmatprep.subr.mxu0 0.0
    %344 = vmatpush2.msra.mxu0 0.0
    %345 = vmatprep.subr.mxu0 0.0
    %346 = vmatpush2.msra.mxu0 0.0
    %347 = vmatprep.subr.mxu0 0.0
    %348 = vmatpush2.msra.mxu0 0.0
    %349 = vmatprep.subr.mxu0 0.0
    %350 = vmatpush2.msra.mxu0 0.0
    %351 = vmatprep.subr.mxu0 0.0
    %352 = vmatpush2.msra.mxu0 0.0
    %353 = vmatprep.subr.mxu0 0.0
    %354 = vmatpush2.msra.mxu0 0.0
    %355 = vmatprep.subr.mxu0 0.0
    %356 = vmatpush2.msra.mxu0 0.0
    %357 = vmatprep.subr.mxu0 0.0
    %358 = vmatpush2.msra.mxu0 0.0
    %359 = vmatprep.subr.mxu0 0.0
    %360 = vmatpush2.msra.mxu0 0.0
    %361 = vmatprep.subr.mxu0 0.0
    %362 = vmatpush2.msra.mxu0 0.0
    %363 = vmatprep.subr.mxu0 0.0
    %364 = vmatpush2.msra.mxu0 0.0
    %365 = vmatprep.subr.mxu0 0.0
    %366 = vmatpush2.msra.mxu0 0.0
    %367 = vmatprep.subr.mxu0 0.0
    %368 = vmatpush2.msra.mxu0 0.0
    %369 = vmatprep.mubr.f32.mxu0 0.0
    %370 = vmatmul.mubr.f32.gmra.mxu0 %v170
    %v371 = vpop.f32.mrf.mxu0
    %v372 = vadd.f32 %v287, %v371
    %v373 = vpop.f32.mrf.mxu0
    %374 = vmatprep.mubr.f32.mxu0 0.0
    %375 = vmatmul.mubr.f32.gmra.mxu0 %v171
    %v376 = vpop.f32.mrf.mxu0
    %v377 = vadd.f32 %v292, %v376
    %v378 = vpop.f32.mrf.mxu0
    %379 = vmatprep.mubr.f32.mxu0 0.0
    %380 = vmatmul.mubr.f32.gmra.mxu0 %v172
    %v381 = vpop.f32.mrf.mxu0
    %v382 = vadd.f32 %v297, %v381
    %v383 = vpop.f32.mrf.mxu0
    %384 = vmatprep.mubr.f32.mxu0 0.0
    %385 = vmatmul.mubr.f32.gmra.mxu0 %v173
    %v386 = vpop.f32.mrf.mxu0
    %v387 = vadd.f32 %v302, %v386
    %v388 = vpop.f32.mrf.mxu0
    %389 = vdwg.mxu0
    %s390 = scalar_lea.vmem [#allocation5], 256
    %v391 = vld [vmem:[%s390] sm:$0xff]
    %v392 = vld [vmem:[%s390 + $0x8] sm:$0xff]
    %v393 = vld [vmem:[%s390 + $0x10] sm:$0xff]
    %v394 = vld [vmem:[%s390 + $0x18] sm:$0xff]
    %v395 = vld [vmem:[%s390 + $0x20] sm:$0xff]
    %v396 = vld [vmem:[%s390 + $0x28] sm:$0xff]
    %v397 = vld [vmem:[%s390 + $0x30] sm:$0xff]
    %v398 = vld [vmem:[%s390 + $0x38] sm:$0xff]
    %v399 = vld [vmem:[%s390 + $0x40] sm:$0xff]
    %v400 = vld [vmem:[%s390 + $0x48] sm:$0xff]
    %v401 = vld [vmem:[%s390 + $0x50] sm:$0xff]
    %v402 = vld [vmem:[%s390 + $0x58] sm:$0xff]
    %v403 = vld [vmem:[%s390 + $0x60] sm:$0xff]
    %v404 = vld [vmem:[%s390 + $0x68] sm:$0xff]
    %v405 = vld [vmem:[%s390 + $0x70] sm:$0xff]
    %v406 = vld [vmem:[%s390 + $0x78] sm:$0xff]
    %407 = vmatprep.subr.mxu0 0.0
    %408 = vmatpush1.msra.mxu0 %v406
    %409 = vmatprep.subr.mxu0 0.0
    %410 = vmatpush1.msra.mxu0 %v405
    %411 = vmatprep.subr.mxu0 0.0
    %412 = vmatpush1.msra.mxu0 %v404
    %413 = vmatprep.subr.mxu0 0.0
    %414 = vmatpush1.msra.mxu0 %v403
    %415 = vmatprep.subr.mxu0 0.0
    %416 = vmatpush1.msra.mxu0 %v402
    %417 = vmatprep.subr.mxu0 0.0
    %418 = vmatpush1.msra.mxu0 %v401
    %419 = vmatprep.subr.mxu0 0.0
    %420 = vmatpush1.msra.mxu0 %v400
    %421 = vmatprep.subr.mxu0 0.0
    %422 = vmatpush1.msra.mxu0 %v399
    %423 = vmatprep.subr.mxu0 0.0
    %424 = vmatpush1.msra.mxu0 %v398
    %425 = vmatprep.subr.mxu0 0.0
    %426 = vmatpush1.msra.mxu0 %v397
    %427 = vmatprep.subr.mxu0 0.0
    %428 = vmatpush1.msra.mxu0 %v396
    %429 = vmatprep.subr.mxu0 0.0
    %430 = vmatpush1.msra.mxu0 %v395
    %431 = vmatprep.subr.mxu0 0.0
    %432 = vmatpush1.msra.mxu0 %v394
    %433 = vmatprep.subr.mxu0 0.0
    %434 = vmatpush1.msra.mxu0 %v393
    %435 = vmatprep.subr.mxu0 0.0
    %436 = vmatpush1.msra.mxu0 %v392
    %437 = vmatprep.subr.mxu0 0.0
    %438 = vmatpush1.msra.mxu0 %v391
    %439 = vmatprep.subr.mxu0 0.0
    %440 = vmatpush2.msra.mxu0 0.0
    %441 = vmatprep.subr.mxu0 0.0
    %442 = vmatpush2.msra.mxu0 0.0
    %443 = vmatprep.subr.mxu0 0.0
    %444 = vmatpush2.msra.mxu0 0.0
    %445 = vmatprep.subr.mxu0 0.0
    %446 = vmatpush2.msra.mxu0 0.0
    %447 = vmatprep.subr.mxu0 0.0
    %448 = vmatpush2.msra.mxu0 0.0
    %449 = vmatprep.subr.mxu0 0.0
    %450 = vmatpush2.msra.mxu0 0.0
    %451 = vmatprep.subr.mxu0 0.0
    %452 = vmatpush2.msra.mxu0 0.0
    %453 = vmatprep.subr.mxu0 0.0
    %454 = vmatpush2.msra.mxu0 0.0
    %455 = vmatprep.subr.mxu0 0.0
    %456 = vmatpush2.msra.mxu0 0.0
    %457 = vmatprep.subr.mxu0 0.0
    %458 = vmatpush2.msra.mxu0 0.0
    %459 = vmatprep.subr.mxu0 0.0
    %460 = vmatpush2.msra.mxu0 0.0
    %461 = vmatprep.subr.mxu0 0.0
    %462 = vmatpush2.msra.mxu0 0.0
    %463 = vmatprep.subr.mxu0 0.0
    %464 = vmatpush2.msra.mxu0 0.0
    %465 = vmatprep.subr.mxu0 0.0
    %466 = vmatpush2.msra.mxu0 0.0
    %467 = vmatprep.subr.mxu0 0.0
    %468 = vmatpush2.msra.mxu0 0.0
    %469 = vmatprep.subr.mxu0 0.0
    %470 = vmatpush2.msra.mxu0 0.0
    %471 = vmatprep.mubr.f32.mxu0 0.0
    %472 = vmatmul.mubr.f32.gmra.mxu0 %v183
    %v473 = vpop.f32.mrf.mxu0
    %v474 = vadd.f32 0.0, %v473
    %v475 = vpop.f32.mrf.mxu0
    %476 = vmatprep.mubr.f32.mxu0 0.0
    %477 = vmatmul.mubr.f32.gmra.mxu0 %v184
    %v478 = vpop.f32.mrf.mxu0
    %v479 = vadd.f32 0.0, %v478
    %v480 = vpop.f32.mrf.mxu0
    %481 = vmatprep.mubr.f32.mxu0 0.0
    %482 = vmatmul.mubr.f32.gmra.mxu0 %v185
    %v483 = vpop.f32.mrf.mxu0
    %v484 = vadd.f32 0.0, %v483
    %v485 = vpop.f32.mrf.mxu0
    %486 = vmatprep.mubr.f32.mxu0 0.0
    %487 = vmatmul.mubr.f32.gmra.mxu0 %v186
    %v488 = vpop.f32.mrf.mxu0
    %v489 = vadd.f32 0.0, %v488
    %v490 = vpop.f32.mrf.mxu0
    %491 = vdwg.mxu0
    %v492 = vadd.f32 %v372, %v474
    %v493 = vadd.f32 %v377, %v479
    %v494 = vadd.f32 %v382, %v484
    %v495 = vadd.f32 %v387, %v489
    %v496 = vadd.f32 %v492, %v493
    %v497 = vadd.f32 %v496, %v494
    %v498 = vadd.f32 %v497, %v495
    %v499 = vrot.slane %v498, 4
    %v500 = vadd.f32 %v498, %v499
    %v501 = vrot.slane %v500, 2
    %v502 = vadd.f32 %v500, %v501
    %v503 = vrot.slane %v502, 1
    %v504 = vadd.f32 %v502, %v503
    %v505 = vmul.f32 %v492, %v492
    %v506 = vmul.f32 %v493, %v493
    %v507 = vmul.f32 %v494, %v494
    %v508 = vmul.f32 %v495, %v495
    %v509 = vadd.f32 %v505, %v506
    %v510 = vadd.f32 %v509, %v507
    %v511 = vadd.f32 %v510, %v508
    %v512 = vrot.slane %v511, 4
    %v513 = vadd.f32 %v511, %v512
    %v514 = vrot.slane %v513, 2
    %v515 = vadd.f32 %v513, %v514
    %v516 = vrot.slane %v515, 1
    %v517 = vadd.f32 %v515, %v516
    %518 = vmatprep.subr.mxu0 0.0
    %519 = vmatpush1.msra.mxu0 %v160
    %520 = vmatprep.subr.mxu0 0.0
    %521 = vmatpush1.msra.mxu0 %v159
    %522 = vmatprep.subr.mxu0 0.0
    %523 = vmatpush1.msra.mxu0 %v158
    %524 = vmatprep.subr.mxu0 0.0
    %525 = vmatpush1.msra.mxu0 %v157
    %526 = vmatprep.subr.mxu0 0.0
    %527 = vmatpush1.msra.mxu0 %v156
    %528 = vmatprep.subr.mxu0 0.0
    %529 = vmatpush1.msra.mxu0 %v155
    %530 = vmatprep.subr.mxu0 0.0
    %531 = vmatpush1.msra.mxu0 %v154
    %532 = vmatprep.subr.mxu0 0.0
    %533 = vmatpush1.msra.mxu0 %v153
    %534 = vmatprep.subr.mxu0 0.0
    %535 = vmatpush1.msra.mxu0 %v152
    %536 = vmatprep.subr.mxu0 0.0
    %537 = vmatpush1.msra.mxu0 %v151
    %538 = vmatprep.subr.mxu0 0.0
    %539 = vmatpush1.msra.mxu0 %v150
    %540 = vmatprep.subr.mxu0 0.0
    %541 = vmatpush1.msra.mxu0 %v149
    %542 = vmatprep.subr.mxu0 0.0
    %543 = vmatpush1.msra.mxu0 %v148
    %544 = vmatprep.subr.mxu0 0.0
    %545 = vmatpush1.msra.mxu0 %v147
    %546 = vmatprep.subr.mxu0 0.0
    %547 = vmatpush1.msra.mxu0 %v146
    %548 = vmatprep.subr.mxu0 0.0
    %549 = vmatpush1.msra.mxu0 %v145
    %550 = vmatprep.subr.mxu0 0.0
    %551 = vmatpush2.msra.mxu0 0.0
    %552 = vmatprep.subr.mxu0 0.0
    %553 = vmatpush2.msra.mxu0 0.0
    %554 = vmatprep.subr.mxu0 0.0
    %555 = vmatpush2.msra.mxu0 0.0
    %556 = vmatprep.subr.mxu0 0.0
    %557 = vmatpush2.msra.mxu0 0.0
    %558 = vmatprep.subr.mxu0 0.0
    %559 = vmatpush2.msra.mxu0 0.0
    %560 = vmatprep.subr.mxu0 0.0
    %561 = vmatpush2.msra.mxu0 0.0
    %562 = vmatprep.subr.mxu0 0.0
    %563 = vmatpush2.msra.mxu0 0.0
    %564 = vmatprep.subr.mxu0 0.0
    %565 = vmatpush2.msra.mxu0 0.0
    %566 = vmatprep.subr.mxu0 0.0
    %567 = vmatpush2.msra.mxu0 0.0
    %568 = vmatprep.subr.mxu0 0.0
    %569 = vmatpush2.msra.mxu0 0.0
    %570 = vmatprep.subr.mxu0 0.0
    %571 = vmatpush2.msra.mxu0 0.0
    %572 = vmatprep.subr.mxu0 0.0
    %573 = vmatpush2.msra.mxu0 0.0
    %574 = vmatprep.subr.mxu0 0.0
    %575 = vmatpush2.msra.mxu0 0.0
    %576 = vmatprep.subr.mxu0 0.0
    %577 = vmatpush2.msra.mxu0 0.0
    %578 = vmatprep.subr.mxu0 0.0
    %579 = vmatpush2.msra.mxu0 0.0
    %580 = vmatprep.subr.mxu0 0.0
    %581 = vmatpush2.msra.mxu0 0.0
    %582 = vmatprep.mubr.f32.mxu0 0.0
    %583 = vmatmul.mubr.f32.gmra.mxu0 %v504
    %v584 = vpop.f32.mrf.mxu0
    %v585 = vadd.f32 0.0, %v584
    %v586 = vpop.f32.mrf.mxu0
    %587 = vdwg.mxu0
    %588 = vmatprep.subr.mxu0 0.0
    %589 = vmatpush1.msra.mxu0 %v160
    %590 = vmatprep.subr.mxu0 0.0
    %591 = vmatpush1.msra.mxu0 %v159
    %592 = vmatprep.subr.mxu0 0.0
    %593 = vmatpush1.msra.mxu0 %v158
    %594 = vmatprep.subr.mxu0 0.0
    %595 = vmatpush1.msra.mxu0 %v157
    %596 = vmatprep.subr.mxu0 0.0
    %597 = vmatpush1.msra.mxu0 %v156
    %598 = vmatprep.subr.mxu0 0.0
    %599 = vmatpush1.msra.mxu0 %v155
    %600 = vmatprep.subr.mxu0 0.0
    %601 = vmatpush1.msra.mxu0 %v154
    %602 = vmatprep.subr.mxu0 0.0
    %603 = vmatpush1.msra.mxu0 %v153
    %604 = vmatprep.subr.mxu0 0.0
    %605 = vmatpush1.msra.mxu0 %v152
    %606 = vmatprep.subr.mxu0 0.0
    %607 = vmatpush1.msra.mxu0 %v151
    %608 = vmatprep.subr.mxu0 0.0
    %609 = vmatpush1.msra.mxu0 %v150
    %610 = vmatprep.subr.mxu0 0.0
    %611 = vmatpush1.msra.mxu0 %v149
    %612 = vmatprep.subr.mxu0 0.0
    %613 = vmatpush1.msra.mxu0 %v148
    %614 = vmatprep.subr.mxu0 0.0
    %615 = vmatpush1.msra.mxu0 %v147
    %616 = vmatprep.subr.mxu0 0.0
    %617 = vmatpush1.msra.mxu0 %v146
    %618 = vmatprep.subr.mxu0 0.0
    %619 = vmatpush1.msra.mxu0 %v145
    %620 = vmatprep.subr.mxu0 0.0
    %621 = vmatpush2.msra.mxu0 0.0
    %622 = vmatprep.subr.mxu0 0.0
    %623 = vmatpush2.msra.mxu0 0.0
    %624 = vmatprep.subr.mxu0 0.0
    %625 = vmatpush2.msra.mxu0 0.0
    %626 = vmatprep.subr.mxu0 0.0
    %627 = vmatpush2.msra.mxu0 0.0
    %628 = vmatprep.subr.mxu0 0.0
    %629 = vmatpush2.msra.mxu0 0.0
    %630 = vmatprep.subr.mxu0 0.0
    %631 = vmatpush2.msra.mxu0 0.0
    %632 = vmatprep.subr.mxu0 0.0
    %633 = vmatpush2.msra.mxu0 0.0
    %634 = vmatprep.subr.mxu0 0.0
    %635 = vmatpush2.msra.mxu0 0.0
    %636 = vmatprep.subr.mxu0 0.0
    %637 = vmatpush2.msra.mxu0 0.0
    %638 = vmatprep.subr.mxu0 0.0
    %639 = vmatpush2.msra.mxu0 0.0
    %640 = vmatprep.subr.mxu0 0.0
    %641 = vmatpush2.msra.mxu0 0.0
    %642 = vmatprep.subr.mxu0 0.0
    %643 = vmatpush2.msra.mxu0 0.0
    %644 = vmatprep.subr.mxu0 0.0
    %645 = vmatpush2.msra.mxu0 0.0
    %646 = vmatprep.subr.mxu0 0.0
    %647 = vmatpush2.msra.mxu0 0.0
    %648 = vmatprep.subr.mxu0 0.0
    %649 = vmatpush2.msra.mxu0 0.0
    %650 = vmatprep.subr.mxu0 0.0
    %651 = vmatpush2.msra.mxu0 0.0
    %652 = vmatprep.mubr.f32.mxu0 0.0
    %653 = vmatmul.mubr.f32.gmra.mxu0 %v517
    %v654 = vpop.f32.mrf.mxu0
    %v655 = vadd.f32 0.0, %v654
    %v656 = vpop.f32.mrf.mxu0
    %657 = vdwg.mxu0
    %v658 = vmul.f32 %v585, %v585
    %v659 = vsub.f32 %v655, %v658
    %v660 = vadd.f32 %v659, 1e-05
    %v661 = vrsqrt.pop %v660
    %v662 = vmul.f32 %v143, %v661
    %v663 = vmul.f32 %v585, %v662
    %v664 = vsub.f32 %v144, %v663
    %v666 = vlaneseq
    %v667 = vshrl.u32 %v666, 7
    %v668 = vsub.s32 0, %v667
    %v669 = vrot.slane %v662, %v668
    %v671 = vmul.f32 %v492, %v669
    %v672 = vmul.f32 %v493, %v669
    %v673 = vmul.f32 %v494, %v669
    %v674 = vmul.f32 %v495, %v669
    %v676 = vlaneseq
    %v677 = vshrl.u32 %v676, 7
    %v678 = vsub.s32 0, %v677
    %v679 = vrot.slane %v664, %v678
    %v681 = vadd.f32 %v671, %v679
    %v682 = vadd.f32 %v672, %v679
    %v683 = vadd.f32 %v673, %v679
    %v684 = vadd.f32 %v674, %v679
    %v685 = vmax.f32 %v681, 0.0
    %v686 = vmax.f32 %v682, 0.0
    %v687 = vmax.f32 %v683, 0.0
    %v688 = vmax.f32 %v684, 0.0
    %v689 = vadd.f32 %v62, %v685
    %v690 = vadd.f32 %v63, %v686
    %v691 = vadd.f32 %v64, %v687
    %v692 = vadd.f32 %v65, %v688
    %v693 = vrot.slane %v689, 7
    %v694 = vrot.slane %v690, 7
    %v695 = vrot.slane %v691, 7
    %v696 = vrot.slane %v692, 7
    %v697 = vsel %vm165, %v695, %v696
    %v698 = vsel %vm165, %v694, %v695
    %v699 = vsel %vm165, %v693, %v694
    %v700 = vsel %vm165, %v696, %v693
    %v701 = vmul.f32 %v700, %v127
    %v702 = vmul.f32 %v699, %v128
    %v703 = vmul.f32 %v698, %v129
    %v704 = vmul.f32 %v697, %v130
    %v705 = vrot.slane %v689, 1
    %v706 = vrot.slane %v690, 1
    %v707 = vrot.slane %v691, 1
    %v708 = vrot.slane %v692, 1
    %v709 = vsel %vm178, %v707, %v708
    %v710 = vsel %vm178, %v706, %v707
    %v711 = vsel %vm178, %v705, %v706
    %v712 = vsel %vm178, %v708, %v705
    %v713 = vmul.f32 %v711, %v139
    %v714 = vmul.f32 %v710, %v140
    %v715 = vmul.f32 %v709, %v141
    %v716 = vmul.f32 %v712, %v142
    %717 = vmatprep.subr.mxu0 0.0
    %718 = vmatpush1.msra.mxu0 %v219
    %719 = vmatprep.subr.mxu0 0.0
    %720 = vmatpush1.msra.mxu0 %v218
    %721 = vmatprep.subr.mxu0 0.0
    %722 = vmatpush1.msra.mxu0 %v217
    %723 = vmatprep.subr.mxu0 0.0
    %724 = vmatpush1.msra.mxu0 %v216
    %725 = vmatprep.subr.mxu0 0.0
    %726 = vmatpush1.msra.mxu0 %v215
    %727 = vmatprep.subr.mxu0 0.0
    %728 = vmatpush1.msra.mxu0 %v214
    %729 = vmatprep.subr.mxu0 0.0
    %730 = vmatpush1.msra.mxu0 %v213
    %731 = vmatprep.subr.mxu0 0.0
    %732 = vmatpush1.msra.mxu0 %v212
    %733 = vmatprep.subr.mxu0 0.0
    %734 = vmatpush1.msra.mxu0 %v211
    %735 = vmatprep.subr.mxu0 0.0
    %736 = vmatpush1.msra.mxu0 %v210
    %737 = vmatprep.subr.mxu0 0.0
    %738 = vmatpush1.msra.mxu0 %v209
    %739 = vmatprep.subr.mxu0 0.0
    %740 = vmatpush1.msra.mxu0 %v208
    %741 = vmatprep.subr.mxu0 0.0
    %742 = vmatpush1.msra.mxu0 %v207
    %743 = vmatprep.subr.mxu0 0.0
    %744 = vmatpush1.msra.mxu0 %v206
    %745 = vmatprep.subr.mxu0 0.0
    %746 = vmatpush1.msra.mxu0 %v205
    %747 = vmatprep.subr.mxu0 0.0
    %748 = vmatpush1.msra.mxu0 %v204
    %749 = vmatprep.subr.mxu0 0.0
    %750 = vmatpush2.msra.mxu0 0.0
    %751 = vmatprep.subr.mxu0 0.0
    %752 = vmatpush2.msra.mxu0 0.0
    %753 = vmatprep.subr.mxu0 0.0
    %754 = vmatpush2.msra.mxu0 0.0
    %755 = vmatprep.subr.mxu0 0.0
    %756 = vmatpush2.msra.mxu0 0.0
    %757 = vmatprep.subr.mxu0 0.0
    %758 = vmatpush2.msra.mxu0 0.0
    %759 = vmatprep.subr.mxu0 0.0
    %760 = vmatpush2.msra.mxu0 0.0
    %761 = vmatprep.subr.mxu0 0.0
    %762 = vmatpush2.msra.mxu0 0.0
    %763 = vmatprep.subr.mxu0 0.0
    %764 = vmatpush2.msra.mxu0 0.0
    %765 = vmatprep.subr.mxu0 0.0
    %766 = vmatpush2.msra.mxu0 0.0
    %767 = vmatprep.subr.mxu0 0.0
    %768 = vmatpush2.msra.mxu0 0.0
    %769 = vmatprep.subr.mxu0 0.0
    %770 = vmatpush2.msra.mxu0 0.0
    %771 = vmatprep.subr.mxu0 0.0
    %772 = vmatpush2.msra.mxu0 0.0
    %773 = vmatprep.subr.mxu0 0.0
    %774 = vmatpush2.msra.mxu0 0.0
    %775 = vmatprep.subr.mxu0 0.0
    %776 = vmatpush2.msra.mxu0 0.0
    %777 = vmatprep.subr.mxu0 0.0
    %778 = vmatpush2.msra.mxu0 0.0
    %779 = vmatprep.subr.mxu0 0.0
    %780 = vmatpush2.msra.mxu0 0.0
    %781 = vmatprep.mubr.f32.mxu0 0.0
    %782 = vmatmul.mubr.f32.gmra.mxu0 %v689
    %v783 = vpop.f32.mrf.mxu0
    %v784 = vadd.f32 0.0, %v783
    %v785 = vpop.f32.mrf.mxu0
    %786 = vmatprep.mubr.f32.mxu0 0.0
    %787 = vmatmul.mubr.f32.gmra.mxu0 %v690
    %v788 = vpop.f32.mrf.mxu0
    %v789 = vadd.f32 0.0, %v788
    %v790 = vpop.f32.mrf.mxu0
    %791 = vmatprep.mubr.f32.mxu0 0.0
    %792 = vmatmul.mubr.f32.gmra.mxu0 %v691
    %v793 = vpop.f32.mrf.mxu0
    %v794 = vadd.f32 0.0, %v793
    %v795 = vpop.f32.mrf.mxu0
    %796 = vmatprep.mubr.f32.mxu0 0.0
    %797 = vmatmul.mubr.f32.gmra.mxu0 %v692
    %v798 = vpop.f32.mrf.mxu0
    %v799 = vadd.f32 0.0, %v798
    %v800 = vpop.f32.mrf.mxu0
    %801 = vdwg.mxu0
    %802 = vmatprep.subr.mxu0 0.0
    %803 = vmatpush1.msra.mxu0 %v202
    %804 = vmatprep.subr.mxu0 0.0
    %805 = vmatpush1.msra.mxu0 %v201
    %806 = vmatprep.subr.mxu0 0.0
    %807 = vmatpush1.msra.mxu0 %v200
    %808 = vmatprep.subr.mxu0 0.0
    %809 = vmatpush1.msra.mxu0 %v199
    %810 = vmatprep.subr.mxu0 0.0
    %811 = vmatpush1.msra.mxu0 %v198
    %812 = vmatprep.subr.mxu0 0.0
    %813 = vmatpush1.msra.mxu0 %v197
    %814 = vmatprep.subr.mxu0 0.0
    %815 = vmatpush1.msra.mxu0 %v196
    %816 = vmatprep.subr.mxu0 0.0
    %817 = vmatpush1.msra.mxu0 %v195
    %818 = vmatprep.subr.mxu0 0.0
    %819 = vmatpush1.msra.mxu0 %v194
    %820 = vmatprep.subr.mxu0 0.0
    %821 = vmatpush1.msra.mxu0 %v193
    %822 = vmatprep.subr.mxu0 0.0
    %823 = vmatpush1.msra.mxu0 %v192
    %824 = vmatprep.subr.mxu0 0.0
    %825 = vmatpush1.msra.mxu0 %v191
    %826 = vmatprep.subr.mxu0 0.0
    %827 = vmatpush1.msra.mxu0 %v190
    %828 = vmatprep.subr.mxu0 0.0
    %829 = vmatpush1.msra.mxu0 %v189
    %830 = vmatprep.subr.mxu0 0.0
    %831 = vmatpush1.msra.mxu0 %v188
    %832 = vmatprep.subr.mxu0 0.0
    %833 = vmatpush1.msra.mxu0 %v187
    %834 = vmatprep.subr.mxu0 0.0
    %835 = vmatpush2.msra.mxu0 0.0
    %836 = vmatprep.subr.mxu0 0.0
    %837 = vmatpush2.msra.mxu0 0.0
    %838 = vmatprep.subr.mxu0 0.0
    %839 = vmatpush2.msra.mxu0 0.0
    %840 = vmatprep.subr.mxu0 0.0
    %841 = vmatpush2.msra.mxu0 0.0
    %842 = vmatprep.subr.mxu0 0.0
    %843 = vmatpush2.msra.mxu0 0.0
    %844 = vmatprep.subr.mxu0 0.0
    %845 = vmatpush2.msra.mxu0 0.0
    %846 = vmatprep.subr.mxu0 0.0
    %847 = vmatpush2.msra.mxu0 0.0
    %848 = vmatprep.subr.mxu0 0.0
    %849 = vmatpush2.msra.mxu0 0.0
    %850 = vmatprep.subr.mxu0 0.0
    %851 = vmatpush2.msra.mxu0 0.0
    %852 = vmatprep.subr.mxu0 0.0
    %853 = vmatpush2.msra.mxu0 0.0
    %854 = vmatprep.subr.mxu0 0.0
    %855 = vmatpush2.msra.mxu0 0.0
    %856 = vmatprep.subr.mxu0 0.0
    %857 = vmatpush2.msra.mxu0 0.0
    %858 = vmatprep.subr.mxu0 0.0
    %859 = vmatpush2.msra.mxu0 0.0
    %860 = vmatprep.subr.mxu0 0.0
    %861 = vmatpush2.msra.mxu0 0.0
    %862 = vmatprep.subr.mxu0 0.0
    %863 = vmatpush2.msra.mxu0 0.0
    %864 = vmatprep.subr.mxu0 0.0
    %865 = vmatpush2.msra.mxu0 0.0
    %866 = vmatprep.mubr.f32.mxu0 0.0
    %867 = vmatmul.mubr.f32.gmra.mxu0 %v701
    %v868 = vpop.f32.mrf.mxu0
    %v869 = vadd.f32 %v784, %v868
    %v870 = vpop.f32.mrf.mxu0
    %871 = vmatprep.mubr.f32.mxu0 0.0
    %872 = vmatmul.mubr.f32.gmra.mxu0 %v702
    %v873 = vpop.f32.mrf.mxu0
    %v874 = vadd.f32 %v789, %v873
    %v875 = vpop.f32.mrf.mxu0
    %876 = vmatprep.mubr.f32.mxu0 0.0
    %877 = vmatmul.mubr.f32.gmra.mxu0 %v703
    %v878 = vpop.f32.mrf.mxu0
    %v879 = vadd.f32 %v794, %v878
    %v880 = vpop.f32.mrf.mxu0
    %881 = vmatprep.mubr.f32.mxu0 0.0
    %882 = vmatmul.mubr.f32.gmra.mxu0 %v704
    %v883 = vpop.f32.mrf.mxu0
    %v884 = vadd.f32 %v799, %v883
    %v885 = vpop.f32.mrf.mxu0
    %886 = vdwg.mxu0
    %887 = vmatprep.subr.mxu0 0.0
    %888 = vmatpush1.msra.mxu0 %v406
    %889 = vmatprep.subr.mxu0 0.0
    %890 = vmatpush1.msra.mxu0 %v405
    %891 = vmatprep.subr.mxu0 0.0
    %892 = vmatpush1.msra.mxu0 %v404
    %893 = vmatprep.subr.mxu0 0.0
    %894 = vmatpush1.msra.mxu0 %v403
    %895 = vmatprep.subr.mxu0 0.0
    %896 = vmatpush1.msra.mxu0 %v402
    %897 = vmatprep.subr.mxu0 0.0
    %898 = vmatpush1.msra.mxu0 %v401
    %899 = vmatprep.subr.mxu0 0.0
    %900 = vmatpush1.msra.mxu0 %v400
    %901 = vmatprep.subr.mxu0 0.0
    %902 = vmatpush1.msra.mxu0 %v399
    %903 = vmatprep.subr.mxu0 0.0
    %904 = vmatpush1.msra.mxu0 %v398
    %905 = vmatprep.subr.mxu0 0.0
    %906 = vmatpush1.msra.mxu0 %v397
    %907 = vmatprep.subr.mxu0 0.0
    %908 = vmatpush1.msra.mxu0 %v396
    %909 = vmatprep.subr.mxu0 0.0
    %910 = vmatpush1.msra.mxu0 %v395
    %911 = vmatprep.subr.mxu0 0.0
    %912 = vmatpush1.msra.mxu0 %v394
    %913 = vmatprep.subr.mxu0 0.0
    %914 = vmatpush1.msra.mxu0 %v393
    %915 = vmatprep.subr.mxu0 0.0
    %916 = vmatpush1.msra.mxu0 %v392
    %917 = vmatprep.subr.mxu0 0.0
    %918 = vmatpush1.msra.mxu0 %v391
    %919 = vmatprep.subr.mxu0 0.0
    %920 = vmatpush2.msra.mxu0 0.0
    %921 = vmatprep.subr.mxu0 0.0
    %922 = vmatpush2.msra.mxu0 0.0
    %923 = vmatprep.subr.mxu0 0.0
    %924 = vmatpush2.msra.mxu0 0.0
    %925 = vmatprep.subr.mxu0 0.0
    %926 = vmatpush2.msra.mxu0 0.0
    %927 = vmatprep.subr.mxu0 0.0
    %928 = vmatpush2.msra.mxu0 0.0
    %929 = vmatprep.subr.mxu0 0.0
    %930 = vmatpush2.msra.mxu0 0.0
    %931 = vmatprep.subr.mxu0 0.0
    %932 = vmatpush2.msra.mxu0 0.0
    %933 = vmatprep.subr.mxu0 0.0
    %934 = vmatpush2.msra.mxu0 0.0
    %935 = vmatprep.subr.mxu0 0.0
    %936 = vmatpush2.msra.mxu0 0.0
    %937 = vmatprep.subr.mxu0 0.0
    %938 = vmatpush2.msra.mxu0 0.0
    %939 = vmatprep.subr.mxu0 0.0
    %940 = vmatpush2.msra.mxu0 0.0
    %941 = vmatprep.subr.mxu0 0.0
    %942 = vmatpush2.msra.mxu0 0.0
    %943 = vmatprep.subr.mxu0 0.0
    %944 = vmatpush2.msra.mxu0 0.0
    %945 = vmatprep.subr.mxu0 0.0
    %946 = vmatpush2.msra.mxu0 0.0
    %947 = vmatprep.subr.mxu0 0.0
    %948 = vmatpush2.msra.mxu0 0.0
    %949 = vmatprep.subr.mxu0 0.0
    %950 = vmatpush2.msra.mxu0 0.0
    %951 = vmatprep.mubr.f32.mxu0 0.0
    %952 = vmatmul.mubr.f32.gmra.mxu0 %v713
    %v953 = vpop.f32.mrf.mxu0
    %v954 = vadd.f32 0.0, %v953
    %v955 = vpop.f32.mrf.mxu0
    %956 = vmatprep.mubr.f32.mxu0 0.0
    %957 = vmatmul.mubr.f32.gmra.mxu0 %v714
    %v958 = vpop.f32.mrf.mxu0
    %v959 = vadd.f32 0.0, %v958
    %v960 = vpop.f32.mrf.mxu0
    %961 = vmatprep.mubr.f32.mxu0 0.0
    %962 = vmatmul.mubr.f32.gmra.mxu0 %v715
    %v963 = vpop.f32.mrf.mxu0
    %v964 = vadd.f32 0.0, %v963
    %v965 = vpop.f32.mrf.mxu0
    %966 = vmatprep.mubr.f32.mxu0 0.0
    %967 = vmatmul.mubr.f32.gmra.mxu0 %v716
    %v968 = vpop.f32.mrf.mxu0
    %v969 = vadd.f32 0.0, %v968
    %v970 = vpop.f32.mrf.mxu0
    %971 = vdwg.mxu0
    %v972 = vadd.f32 %v869, %v954
    %v973 = vadd.f32 %v874, %v959
    %v974 = vadd.f32 %v879, %v964
    %v975 = vadd.f32 %v884, %v969
    %v976 = vadd.f32 %v972, %v973
    %v977 = vadd.f32 %v976, %v974
    %v978 = vadd.f32 %v977, %v975
    %v979 = vrot.slane %v978, 4
    %v980 = vadd.f32 %v978, %v979
    %v981 = vrot.slane %v980, 2
    %v982 = vadd.f32 %v980, %v981
    %v983 = vrot.slane %v982, 1
    %v984 = vadd.f32 %v982, %v983
    %v985 = vmul.f32 %v972, %v972
    %v986 = vmul.f32 %v973, %v973
    %v987 = vmul.f32 %v974, %v974
    %v988 = vmul.f32 %v975, %v975
    %v989 = vadd.f32 %v985, %v986
    %v990 = vadd.f32 %v989, %v987
    %v991 = vadd.f32 %v990, %v988
    %v992 = vrot.slane %v991, 4
    %v993 = vadd.f32 %v991, %v992
    %v994 = vrot.slane %v993, 2
    %v995 = vadd.f32 %v993, %v994
    %v996 = vrot.slane %v995, 1
    %v997 = vadd.f32 %v995, %v996
    %998 = vmatprep.subr.mxu0 0.0
    %999 = vmatpush1.msra.mxu0 %v160
    %1000 = vmatprep.subr.mxu0 0.0
    %1001 = vmatpush1.msra.mxu0 %v159
    %1002 = vmatprep.subr.mxu0 0.0
    %1003 = vmatpush1.msra.mxu0 %v158
    %1004 = vmatprep.subr.mxu0 0.0
    %1005 = vmatpush1.msra.mxu0 %v157
    %1006 = vmatprep.subr.mxu0 0.0
    %1007 = vmatpush1.msra.mxu0 %v156
    %1008 = vmatprep.subr.mxu0 0.0
    %1009 = vmatpush1.msra.mxu0 %v155
    %1010 = vmatprep.subr.mxu0 0.0
    %1011 = vmatpush1.msra.mxu0 %v154
    %1012 = vmatprep.subr.mxu0 0.0
    %1013 = vmatpush1.msra.mxu0 %v153
    %1014 = vmatprep.subr.mxu0 0.0
    %1015 = vmatpush1.msra.mxu0 %v152
    %1016 = vmatprep.subr.mxu0 0.0
    %1017 = vmatpush1.msra.mxu0 %v151
    %1018 = vmatprep.subr.mxu0 0.0
    %1019 = vmatpush1.msra.mxu0 %v150
    %1020 = vmatprep.subr.mxu0 0.0
    %1021 = vmatpush1.msra.mxu0 %v149
    %1022 = vmatprep.subr.mxu0 0.0
    %1023 = vmatpush1.msra.mxu0 %v148
    %1024 = vmatprep.subr.mxu0 0.0
    %1025 = vmatpush1.msra.mxu0 %v147
    %1026 = vmatprep.subr.mxu0 0.0
    %1027 = vmatpush1.msra.mxu0 %v146
    %1028 = vmatprep.subr.mxu0 0.0
    %1029 = vmatpush1.msra.mxu0 %v145
    %1030 = vmatprep.subr.mxu0 0.0
    %1031 = vmatpush2.msra.mxu0 0.0
    %1032 = vmatprep.subr.mxu0 0.0
    %1033 = vmatpush2.msra.mxu0 0.0
    %1034 = vmatprep.subr.mxu0 0.0
    %1035 = vmatpush2.msra.mxu0 0.0
    %1036 = vmatprep.subr.mxu0 0.0
    %1037 = vmatpush2.msra.mxu0 0.0
    %1038 = vmatprep.subr.mxu0 0.0
    %1039 = vmatpush2.msra.mxu0 0.0
    %1040 = vmatprep.subr.mxu0 0.0
    %1041 = vmatpush2.msra.mxu0 0.0
    %1042 = vmatprep.subr.mxu0 0.0
    %1043 = vmatpush2.msra.mxu0 0.0
    %1044 = vmatprep.subr.mxu0 0.0
    %1045 = vmatpush2.msra.mxu0 0.0
    %1046 = vmatprep.subr.mxu0 0.0
    %1047 = vmatpush2.msra.mxu0 0.0
    %1048 = vmatprep.subr.mxu0 0.0
    %1049 = vmatpush2.msra.mxu0 0.0
    %1050 = vmatprep.subr.mxu0 0.0
    %1051 = vmatpush2.msra.mxu0 0.0
    %1052 = vmatprep.subr.mxu0 0.0
    %1053 = vmatpush2.msra.mxu0 0.0
    %1054 = vmatprep.subr.mxu0 0.0
    %1055 = vmatpush2.msra.mxu0 0.0
    %1056 = vmatprep.subr.mxu0 0.0
    %1057 = vmatpush2.msra.mxu0 0.0
    %1058 = vmatprep.subr.mxu0 0.0
    %1059 = vmatpush2.msra.mxu0 0.0
    %1060 = vmatprep.subr.mxu0 0.0
    %1061 = vmatpush2.msra.mxu0 0.0
    %1062 = vmatprep.mubr.f32.mxu0 0.0
    %1063 = vmatmul.mubr.f32.gmra.mxu0 %v984
    %v1064 = vpop.f32.mrf.mxu0
    %v1065 = vadd.f32 0.0, %v1064
    %v1066 = vpop.f32.mrf.mxu0
    %1067 = vdwg.mxu0
    %1068 = vmatprep.subr.mxu0 0.0
    %1069 = vmatpush1.msra.mxu0 %v160
    %1070 = vmatprep.subr.mxu0 0.0
    %1071 = vmatpush1.msra.mxu0 %v159
    %1072 = vmatprep.subr.mxu0 0.0
    %1073 = vmatpush1.msra.mxu0 %v158
    %1074 = vmatprep.subr.mxu0 0.0
    %1075 = vmatpush1.msra.mxu0 %v157
    %1076 = vmatprep.subr.mxu0 0.0
    %1077 = vmatpush1.msra.mxu0 %v156
    %1078 = vmatprep.subr.mxu0 0.0
    %1079 = vmatpush1.msra.mxu0 %v155
    %1080 = vmatprep.subr.mxu0 0.0
    %1081 = vmatpush1.msra.mxu0 %v154
    %1082 = vmatprep.subr.mxu0 0.0
    %1083 = vmatpush1.msra.mxu0 %v153
    %1084 = vmatprep.subr.mxu0 0.0
    %1085 = vmatpush1.msra.mxu0 %v152
    %1086 = vmatprep.subr.mxu0 0.0
    %1087 = vmatpush1.msra.mxu0 %v151
    %1088 = vmatprep.subr.mxu0 0.0
    %1089 = vmatpush1.msra.mxu0 %v150
    %1090 = vmatprep.subr.mxu0 0.0
    %1091 = vmatpush1.msra.mxu0 %v149
    %1092 = vmatprep.subr.mxu0 0.0
    %1093 = vmatpush1.msra.mxu0 %v148
    %1094 = vmatprep.subr.mxu0 0.0
    %1095 = vmatpush1.msra.mxu0 %v147
    %1096 = vmatprep.subr.mxu0 0.0
    %1097 = vmatpush1.msra.mxu0 %v146
    %1098 = vmatprep.subr.mxu0 0.0
    %1099 = vmatpush1.msra.mxu0 %v145
    %1100 = vmatprep.subr.mxu0 0.0
    %1101 = vmatpush2.msra.mxu0 0.0
    %1102 = vmatprep.subr.mxu0 0.0
    %1103 = vmatpush2.msra.mxu0 0.0
    %1104 = vmatprep.subr.mxu0 0.0
    %1105 = vmatpush2.msra.mxu0 0.0
    %1106 = vmatprep.subr.mxu0 0.0
    %1107 = vmatpush2.msra.mxu0 0.0
    %1108 = vmatprep.subr.mxu0 0.0
    %1109 = vmatpush2.msra.mxu0 0.0
    %1110 = vmatprep.subr.mxu0 0.0
    %1111 = vmatpush2.msra.mxu0 0.0
    %1112 = vmatprep.subr.mxu0 0.0
    %1113 = vmatpush2.msra.mxu0 0.0
    %1114 = vmatprep.subr.mxu0 0.0
    %1115 = vmatpush2.msra.mxu0 0.0
    %1116 = vmatprep.subr.mxu0 0.0
    %1117 = vmatpush2.msra.mxu0 0.0
    %1118 = vmatprep.subr.mxu0 0.0
    %1119 = vmatpush2.msra.mxu0 0.0
    %1120 = vmatprep.subr.mxu0 0.0
    %1121 = vmatpush2.msra.mxu0 0.0
    %1122 = vmatprep.subr.mxu0 0.0
    %1123 = vmatpush2.msra.mxu0 0.0
    %1124 = vmatprep.subr.mxu0 0.0
    %1125 = vmatpush2.msra.mxu0 0.0
    %1126 = vmatprep.subr.mxu0 0.0
    %1127 = vmatpush2.msra.mxu0 0.0
    %1128 = vmatprep.subr.mxu0 0.0
    %1129 = vmatpush2.msra.mxu0 0.0
    %1130 = vmatprep.subr.mxu0 0.0
    %1131 = vmatpush2.msra.mxu0 0.0
    %1132 = vmatprep.mubr.f32.mxu0 0.0
    %1133 = vmatmul.mubr.f32.gmra.mxu0 %v997
    %v1134 = vpop.f32.mrf.mxu0
    %v1135 = vadd.f32 0.0, %v1134
    %v1136 = vpop.f32.mrf.mxu0
    %1137 = vdwg.mxu0
    %v1138 = vmul.f32 %v1065, %v1065
    %v1139 = vsub.f32 %v1135, %v1138
    %v1140 = vadd.f32 %v1139, 1e-05
    %v1141 = vrsqrt.pop %v1140
    %v1142 = vmul.f32 %v143, %v1141
    %v1143 = vmul.f32 %v1065, %v1142
    %v1144 = vsub.f32 %v144, %v1143
    %v1146 = vlaneseq
    %v1147 = vshrl.u32 %v1146, 7
    %v1148 = vsub.s32 0, %v1147
    %v1149 = vrot.slane %v1142, %v1148
    %v1151 = vmul.f32 %v972, %v1149
    %v1152 = vmul.f32 %v973, %v1149
    %v1153 = vmul.f32 %v974, %v1149
    %v1154 = vmul.f32 %v975, %v1149
    %v1156 = vlaneseq
    %v1157 = vshrl.u32 %v1156, 7
    %v1158 = vsub.s32 0, %v1157
    %v1159 = vrot.slane %v1144, %v1158
    %v1161 = vadd.f32 %v1151, %v1159
    %v1162 = vadd.f32 %v1152, %v1159
    %v1163 = vadd.f32 %v1153, %v1159
    %v1164 = vadd.f32 %v1154, %v1159
    %v1165 = vmax.f32 %v1161, 0.0
    %v1166 = vmax.f32 %v1162, 0.0
    %v1167 = vmax.f32 %v1163, 0.0
    %v1168 = vmax.f32 %v1164, 0.0
    %v1169 = vadd.f32 %v62, %v1165
    %v1170 = vadd.f32 %v63, %v1166
    %v1171 = vadd.f32 %v64, %v1167
    %v1172 = vadd.f32 %v65, %v1168
    %v1173 = vrot.slane %v1169, 7
    %v1174 = vrot.slane %v1170, 7
    %v1175 = vrot.slane %v1171, 7
    %v1176 = vrot.slane %v1172, 7
    %v1177 = vsel %vm165, %v1175, %v1176
    %v1178 = vsel %vm165, %v1174, %v1175
    %v1179 = vsel %vm165, %v1173, %v1174
    %v1180 = vsel %vm165, %v1176, %v1173
    %v1181 = vmul.f32 %v1180, %v127
    %v1182 = vmul.f32 %v1179, %v128
    %v1183 = vmul.f32 %v1178, %v129
    %v1184 = vmul.f32 %v1177, %v130
    %v1185 = vrot.slane %v1169, 1
    %v1186 = vrot.slane %v1170, 1
    %v1187 = vrot.slane %v1171, 1
    %v1188 = vrot.slane %v1172, 1
    %v1189 = vsel %vm178, %v1187, %v1188
    %v1190 = vsel %vm178, %v1186, %v1187
    %v1191 = vsel %vm178, %v1185, %v1186
    %v1192 = vsel %vm178, %v1188, %v1185
    %v1193 = vmul.f32 %v1191, %v139
    %v1194 = vmul.f32 %v1190, %v140
    %v1195 = vmul.f32 %v1189, %v141
    %v1196 = vmul.f32 %v1192, %v142
    %1197 = vmatprep.subr.mxu0 0.0
    %1198 = vmatpush1.msra.mxu0 %v219
    %1199 = vmatprep.subr.mxu0 0.0
    %1200 = vmatpush1.msra.mxu0 %v218
    %1201 = vmatprep.subr.mxu0 0.0
    %1202 = vmatpush1.msra.mxu0 %v217
    %1203 = vmatprep.subr.mxu0 0.0
    %1204 = vmatpush1.msra.mxu0 %v216
    %1205 = vmatprep.subr.mxu0 0.0
    %1206 = vmatpush1.msra.mxu0 %v215
    %1207 = vmatprep.subr.mxu0 0.0
    %1208 = vmatpush1.msra.mxu0 %v214
    %1209 = vmatprep.subr.mxu0 0.0
    %1210 = vmatpush1.msra.mxu0 %v213
    %1211 = vmatprep.subr.mxu0 0.0
    %1212 = vmatpush1.msra.mxu0 %v212
    %1213 = vmatprep.subr.mxu0 0.0
    %1214 = vmatpush1.msra.mxu0 %v211
    %1215 = vmatprep.subr.mxu0 0.0
    %1216 = vmatpush1.msra.mxu0 %v210
    %1217 = vmatprep.subr.mxu0 0.0
    %1218 = vmatpush1.msra.mxu0 %v209
    %1219 = vmatprep.subr.mxu0 0.0
    %1220 = vmatpush1.msra.mxu0 %v208
    %1221 = vmatprep.subr.mxu0 0.0
    %1222 = vmatpush1.msra.mxu0 %v207
    %1223 = vmatprep.subr.mxu0 0.0
    %1224 = vmatpush1.msra.mxu0 %v206
    %1225 = vmatprep.subr.mxu0 0.0
    %1226 = vmatpush1.msra.mxu0 %v205
    %1227 = vmatprep.subr.mxu0 0.0
    %1228 = vmatpush1.msra.mxu0 %v204
    %1229 = vmatprep.subr.mxu0 0.0
    %1230 = vmatpush2.msra.mxu0 0.0
    %1231 = vmatprep.subr.mxu0 0.0
    %1232 = vmatpush2.msra.mxu0 0.0
    %1233 = vmatprep.subr.mxu0 0.0
    %1234 = vmatpush2.msra.mxu0 0.0
    %1235 = vmatprep.subr.mxu0 0.0
    %1236 = vmatpush2.msra.mxu0 0.0
    %1237 = vmatprep.subr.mxu0 0.0
    %1238 = vmatpush2.msra.mxu0 0.0
    %1239 = vmatprep.subr.mxu0 0.0
    %1240 = vmatpush2.msra.mxu0 0.0
    %1241 = vmatprep.subr.mxu0 0.0
    %1242 = vmatpush2.msra.mxu0 0.0
    %1243 = vmatprep.subr.mxu0 0.0
    %1244 = vmatpush2.msra.mxu0 0.0
    %1245 = vmatprep.subr.mxu0 0.0
    %1246 = vmatpush2.msra.mxu0 0.0
    %1247 = vmatprep.subr.mxu0 0.0
    %1248 = vmatpush2.msra.mxu0 0.0
    %1249 = vmatprep.subr.mxu0 0.0
    %1250 = vmatpush2.msra.mxu0 0.0
    %1251 = vmatprep.subr.mxu0 0.0
    %1252 = vmatpush2.msra.mxu0 0.0
    %1253 = vmatprep.subr.mxu0 0.0
    %1254 = vmatpush2.msra.mxu0 0.0
    %1255 = vmatprep.subr.mxu0 0.0
    %1256 = vmatpush2.msra.mxu0 0.0
    %1257 = vmatprep.subr.mxu0 0.0
    %1258 = vmatpush2.msra.mxu0 0.0
    %1259 = vmatprep.subr.mxu0 0.0
    %1260 = vmatpush2.msra.mxu0 0.0
    %1261 = vmatprep.mubr.f32.mxu0 0.0
    %1262 = vmatmul.mubr.f32.gmra.mxu0 %v1169
    %v1263 = vpop.f32.mrf.mxu0
    %v1264 = vadd.f32 0.0, %v1263
    %v1265 = vpop.f32.mrf.mxu0
    %1266 = vmatprep.mubr.f32.mxu0 0.0
    %1267 = vmatmul.mubr.f32.gmra.mxu0 %v1170
    %v1268 = vpop.f32.mrf.mxu0
    %v1269 = vadd.f32 0.0, %v1268
    %v1270 = vpop.f32.mrf.mxu0
    %1271 = vmatprep.mubr.f32.mxu0 0.0
    %1272 = vmatmul.mubr.f32.gmra.mxu0 %v1171
    %v1273 = vpop.f32.mrf.mxu0
    %v1274 = vadd.f32 0.0, %v1273
    %v1275 = vpop.f32.mrf.mxu0
    %1276 = vmatprep.mubr.f32.mxu0 0.0
    %1277 = vmatmul.mubr.f32.gmra.mxu0 %v1172
    %v1278 = vpop.f32.mrf.mxu0
    %v1279 = vadd.f32 0.0, %v1278
    %v1280 = vpop.f32.mrf.mxu0
    %1281 = vdwg.mxu0
    %1282 = vmatprep.subr.mxu0 0.0
    %1283 = vmatpush1.msra.mxu0 %v202
    %1284 = vmatprep.subr.mxu0 0.0
    %1285 = vmatpush1.msra.mxu0 %v201
    %1286 = vmatprep.subr.mxu0 0.0
    %1287 = vmatpush1.msra.mxu0 %v200
    %1288 = vmatprep.subr.mxu0 0.0
    %1289 = vmatpush1.msra.mxu0 %v199
    %1290 = vmatprep.subr.mxu0 0.0
    %1291 = vmatpush1.msra.mxu0 %v198
    %1292 = vmatprep.subr.mxu0 0.0
    %1293 = vmatpush1.msra.mxu0 %v197
    %1294 = vmatprep.subr.mxu0 0.0
    %1295 = vmatpush1.msra.mxu0 %v196
    %1296 = vmatprep.subr.mxu0 0.0
    %1297 = vmatpush1.msra.mxu0 %v195
    %1298 = vmatprep.subr.mxu0 0.0
    %1299 = vmatpush1.msra.mxu0 %v194
    %1300 = vmatprep.subr.mxu0 0.0
    %1301 = vmatpush1.msra.mxu0 %v193
    %1302 = vmatprep.subr.mxu0 0.0
    %1303 = vmatpush1.msra.mxu0 %v192
    %1304 = vmatprep.subr.mxu0 0.0
    %1305 = vmatpush1.msra.mxu0 %v191
    %1306 = vmatprep.subr.mxu0 0.0
    %1307 = vmatpush1.msra.mxu0 %v190
    %1308 = vmatprep.subr.mxu0 0.0
    %1309 = vmatpush1.msra.mxu0 %v189
    %1310 = vmatprep.subr.mxu0 0.0
    %1311 = vmatpush1.msra.mxu0 %v188
    %1312 = vmatprep.subr.mxu0 0.0
    %1313 = vmatpush1.msra.mxu0 %v187
    %1314 = vmatprep.subr.mxu0 0.0
    %1315 = vmatpush2.msra.mxu0 0.0
    %1316 = vmatprep.subr.mxu0 0.0
    %1317 = vmatpush2.msra.mxu0 0.0
    %1318 = vmatprep.subr.mxu0 0.0
    %1319 = vmatpush2.msra.mxu0 0.0
    %1320 = vmatprep.subr.mxu0 0.0
    %1321 = vmatpush2.msra.mxu0 0.0
    %1322 = vmatprep.subr.mxu0 0.0
    %1323 = vmatpush2.msra.mxu0 0.0
    %1324 = vmatprep.subr.mxu0 0.0
    %1325 = vmatpush2.msra.mxu0 0.0
    %1326 = vmatprep.subr.mxu0 0.0
    %1327 = vmatpush2.msra.mxu0 0.0
    %1328 = vmatprep.subr.mxu0 0.0
    %1329 = vmatpush2.msra.mxu0 0.0
    %1330 = vmatprep.subr.mxu0 0.0
    %1331 = vmatpush2.msra.mxu0 0.0
    %1332 = vmatprep.subr.mxu0 0.0
    %1333 = vmatpush2.msra.mxu0 0.0
    %1334 = vmatprep.subr.mxu0 0.0
    %1335 = vmatpush2.msra.mxu0 0.0
    %1336 = vmatprep.subr.mxu0 0.0
    %1337 = vmatpush2.msra.mxu0 0.0
    %1338 = vmatprep.subr.mxu0 0.0
    %1339 = vmatpush2.msra.mxu0 0.0
    %1340 = vmatprep.subr.mxu0 0.0
    %1341 = vmatpush2.msra.mxu0 0.0
    %1342 = vmatprep.subr.mxu0 0.0
    %1343 = vmatpush2.msra.mxu0 0.0
    %1344 = vmatprep.subr.mxu0 0.0
    %1345 = vmatpush2.msra.mxu0 0.0
    %1346 = vmatprep.mubr.f32.mxu0 0.0
    %1347 = vmatmul.mubr.f32.gmra.mxu0 %v1181
    %v1348 = vpop.f32.mrf.mxu0
    %v1349 = vadd.f32 %v1264, %v1348
    %v1350 = vpop.f32.mrf.mxu0
    %1351 = vmatprep.mubr.f32.mxu0 0.0
    %1352 = vmatmul.mubr.f32.gmra.mxu0 %v1182
    %v1353 = vpop.f32.mrf.mxu0
    %v1354 = vadd.f32 %v1269, %v1353
    %v1355 = vpop.f32.mrf.mxu0
    %1356 = vmatprep.mubr.f32.mxu0 0.0
    %1357 = vmatmul.mubr.f32.gmra.mxu0 %v1183
    %v1358 = vpop.f32.mrf.mxu0
    %v1359 = vadd.f32 %v1274, %v1358
    %v1360 = vpop.f32.mrf.mxu0
    %1361 = vmatprep.mubr.f32.mxu0 0.0
    %1362 = vmatmul.mubr.f32.gmra.mxu0 %v1184
    %v1363 = vpop.f32.mrf.mxu0
    %v1364 = vadd.f32 %v1279, %v1363
    %v1365 = vpop.f32.mrf.mxu0
    %1366 = vdwg.mxu0
    %1367 = vmatprep.subr.mxu0 0.0
    %1368 = vmatpush1.msra.mxu0 %v406
    %1369 = vmatprep.subr.mxu0 0.0
    %1370 = vmatpush1.msra.mxu0 %v405
    %1371 = vmatprep.subr.mxu0 0.0
    %1372 = vmatpush1.msra.mxu0 %v404
    %1373 = vmatprep.subr.mxu0 0.0
    %1374 = vmatpush1.msra.mxu0 %v403
    %1375 = vmatprep.subr.mxu0 0.0
    %1376 = vmatpush1.msra.mxu0 %v402
    %1377 = vmatprep.subr.mxu0 0.0
    %1378 = vmatpush1.msra.mxu0 %v401
    %1379 = vmatprep.subr.mxu0 0.0
    %1380 = vmatpush1.msra.mxu0 %v400
    %1381 = vmatprep.subr.mxu0 0.0
    %1382 = vmatpush1.msra.mxu0 %v399
    %1383 = vmatprep.subr.mxu0 0.0
    %1384 = vmatpush1.msra.mxu0 %v398
    %1385 = vmatprep.subr.mxu0 0.0
    %1386 = vmatpush1.msra.mxu0 %v397
    %1387 = vmatprep.subr.mxu0 0.0
    %1388 = vmatpush1.msra.mxu0 %v396
    %1389 = vmatprep.subr.mxu0 0.0
    %1390 = vmatpush1.msra.mxu0 %v395
    %1391 = vmatprep.subr.mxu0 0.0
    %1392 = vmatpush1.msra.mxu0 %v394
    %1393 = vmatprep.subr.mxu0 0.0
    %1394 = vmatpush1.msra.mxu0 %v393
    %1395 = vmatprep.subr.mxu0 0.0
    %1396 = vmatpush1.msra.mxu0 %v392
    %1397 = vmatprep.subr.mxu0 0.0
    %1398 = vmatpush1.msra.mxu0 %v391
    %1399 = vmatprep.subr.mxu0 0.0
    %1400 = vmatpush2.msra.mxu0 0.0
    %1401 = vmatprep.subr.mxu0 0.0
    %1402 = vmatpush2.msra.mxu0 0.0
    %1403 = vmatprep.subr.mxu0 0.0
    %1404 = vmatpush2.msra.mxu0 0.0
    %1405 = vmatprep.subr.mxu0 0.0
    %1406 = vmatpush2.msra.mxu0 0.0
    %1407 = vmatprep.subr.mxu0 0.0
    %1408 = vmatpush2.msra.mxu0 0.0
    %1409 = vmatprep.subr.mxu0 0.0
    %1410 = vmatpush2.msra.mxu0 0.0
    %1411 = vmatprep.subr.mxu0 0.0
    %1412 = vmatpush2.msra.mxu0 0.0
    %1413 = vmatprep.subr.mxu0 0.0
    %1414 = vmatpush2.msra.mxu0 0.0
    %1415 = vmatprep.subr.mxu0 0.0
    %1416 = vmatpush2.msra.mxu0 0.0
    %1417 = vmatprep.subr.mxu0 0.0
    %1418 = vmatpush2.msra.mxu0 0.0
    %1419 = vmatprep.subr.mxu0 0.0
    %1420 = vmatpush2.msra.mxu0 0.0
    %1421 = vmatprep.subr.mxu0 0.0
    %1422 = vmatpush2.msra.mxu0 0.0
    %1423 = vmatprep.subr.mxu0 0.0
    %1424 = vmatpush2.msra.mxu0 0.0
    %1425 = vmatprep.subr.mxu0 0.0
    %1426 = vmatpush2.msra.mxu0 0.0
    %1427 = vmatprep.subr.mxu0 0.0
    %1428 = vmatpush2.msra.mxu0 0.0
    %1429 = vmatprep.subr.mxu0 0.0
    %1430 = vmatpush2.msra.mxu0 0.0
    %1431 = vmatprep.mubr.f32.mxu0 0.0
    %1432 = vmatmul.mubr.f32.gmra.mxu0 %v1193
    %v1433 = vpop.f32.mrf.mxu0
    %v1434 = vadd.f32 0.0, %v1433
    %v1435 = vpop.f32.mrf.mxu0
    %1436 = vmatprep.mubr.f32.mxu0 0.0
    %1437 = vmatmul.mubr.f32.gmra.mxu0 %v1194
    %v1438 = vpop.f32.mrf.mxu0
    %v1439 = vadd.f32 0.0, %v1438
    %v1440 = vpop.f32.mrf.mxu0
    %1441 = vmatprep.mubr.f32.mxu0 0.0
    %1442 = vmatmul.mubr.f32.gmra.mxu0 %v1195
    %v1443 = vpop.f32.mrf.mxu0
    %v1444 = vadd.f32 0.0, %v1443
    %v1445 = vpop.f32.mrf.mxu0
    %1446 = vmatprep.mubr.f32.mxu0 0.0
    %1447 = vmatmul.mubr.f32.gmra.mxu0 %v1196
    %v1448 = vpop.f32.mrf.mxu0
    %v1449 = vadd.f32 0.0, %v1448
    %v1450 = vpop.f32.mrf.mxu0
    %1451 = vdwg.mxu0
    %v1452 = vadd.f32 %v1349, %v1434
    %v1453 = vadd.f32 %v1354, %v1439
    %v1454 = vadd.f32 %v1359, %v1444
    %v1455 = vadd.f32 %v1364, %v1449
    %v1456 = vadd.f32 %v1452, %v1453
    %v1457 = vadd.f32 %v1456, %v1454
    %v1458 = vadd.f32 %v1457, %v1455
    %v1459 = vrot.slane %v1458, 4
    %v1460 = vadd.f32 %v1458, %v1459
    %v1461 = vrot.slane %v1460, 2
    %v1462 = vadd.f32 %v1460, %v1461
    %v1463 = vrot.slane %v1462, 1
    %v1464 = vadd.f32 %v1462, %v1463
    %v1465 = vmul.f32 %v1452, %v1452
    %v1466 = vmul.f32 %v1453, %v1453
    %v1467 = vmul.f32 %v1454, %v1454
    %v1468 = vmul.f32 %v1455, %v1455
    %v1469 = vadd.f32 %v1465, %v1466
    %v1470 = vadd.f32 %v1469, %v1467
    %v1471 = vadd.f32 %v1470, %v1468
    %v1472 = vrot.slane %v1471, 4
    %v1473 = vadd.f32 %v1471, %v1472
    %v1474 = vrot.slane %v1473, 2
    %v1475 = vadd.f32 %v1473, %v1474
    %v1476 = vrot.slane %v1475, 1
    %v1477 = vadd.f32 %v1475, %v1476
    %1478 = vmatprep.subr.mxu0 0.0
    %1479 = vmatpush1.msra.mxu0 %v160
    %1480 = vmatprep.subr.mxu0 0.0
    %1481 = vmatpush1.msra.mxu0 %v159
    %1482 = vmatprep.subr.mxu0 0.0
    %1483 = vmatpush1.msra.mxu0 %v158
    %1484 = vmatprep.subr.mxu0 0.0
    %1485 = vmatpush1.msra.mxu0 %v157
    %1486 = vmatprep.subr.mxu0 0.0
    %1487 = vmatpush1.msra.mxu0 %v156
    %1488 = vmatprep.subr.mxu0 0.0
    %1489 = vmatpush1.msra.mxu0 %v155
    %1490 = vmatprep.subr.mxu0 0.0
    %1491 = vmatpush1.msra.mxu0 %v154
    %1492 = vmatprep.subr.mxu0 0.0
    %1493 = vmatpush1.msra.mxu0 %v153
    %1494 = vmatprep.subr.mxu0 0.0
    %1495 = vmatpush1.msra.mxu0 %v152
    %1496 = vmatprep.subr.mxu0 0.0
    %1497 = vmatpush1.msra.mxu0 %v151
    %1498 = vmatprep.subr.mxu0 0.0
    %1499 = vmatpush1.msra.mxu0 %v150
    %1500 = vmatprep.subr.mxu0 0.0
    %1501 = vmatpush1.msra.mxu0 %v149
    %1502 = vmatprep.subr.mxu0 0.0
    %1503 = vmatpush1.msra.mxu0 %v148
    %1504 = vmatprep.subr.mxu0 0.0
    %1505 = vmatpush1.msra.mxu0 %v147
    %1506 = vmatprep.subr.mxu0 0.0
    %1507 = vmatpush1.msra.mxu0 %v146
    %1508 = vmatprep.subr.mxu0 0.0
    %1509 = vmatpush1.msra.mxu0 %v145
    %1510 = vmatprep.subr.mxu0 0.0
    %1511 = vmatpush2.msra.mxu0 0.0
    %1512 = vmatprep.subr.mxu0 0.0
    %1513 = vmatpush2.msra.mxu0 0.0
    %1514 = vmatprep.subr.mxu0 0.0
    %1515 = vmatpush2.msra.mxu0 0.0
    %1516 = vmatprep.subr.mxu0 0.0
    %1517 = vmatpush2.msra.mxu0 0.0
    %1518 = vmatprep.subr.mxu0 0.0
    %1519 = vmatpush2.msra.mxu0 0.0
    %1520 = vmatprep.subr.mxu0 0.0
    %1521 = vmatpush2.msra.mxu0 0.0
    %1522 = vmatprep.subr.mxu0 0.0
    %1523 = vmatpush2.msra.mxu0 0.0
    %1524 = vmatprep.subr.mxu0 0.0
    %1525 = vmatpush2.msra.mxu0 0.0
    %1526 = vmatprep.subr.mxu0 0.0
    %1527 = vmatpush2.msra.mxu0 0.0
    %1528 = vmatprep.subr.mxu0 0.0
    %1529 = vmatpush2.msra.mxu0 0.0
    %1530 = vmatprep.subr.mxu0 0.0
    %1531 = vmatpush2.msra.mxu0 0.0
    %1532 = vmatprep.subr.mxu0 0.0
    %1533 = vmatpush2.msra.mxu0 0.0
    %1534 = vmatprep.subr.mxu0 0.0
    %1535 = vmatpush2.msra.mxu0 0.0
    %1536 = vmatprep.subr.mxu0 0.0
    %1537 = vmatpush2.msra.mxu0 0.0
    %1538 = vmatprep.subr.mxu0 0.0
    %1539 = vmatpush2.msra.mxu0 0.0
    %1540 = vmatprep.subr.mxu0 0.0
    %1541 = vmatpush2.msra.mxu0 0.0
    %1542 = vmatprep.mubr.f32.mxu0 0.0
    %1543 = vmatmul.mubr.f32.gmra.mxu0 %v1464
    %v1544 = vpop.f32.mrf.mxu0
    %v1545 = vadd.f32 0.0, %v1544
    %v1546 = vpop.f32.mrf.mxu0
    %1547 = vdwg.mxu0
    %1548 = vmatprep.subr.mxu0 0.0
    %1549 = vmatpush1.msra.mxu0 %v160
    %1550 = vmatprep.subr.mxu0 0.0
    %1551 = vmatpush1.msra.mxu0 %v159
    %1552 = vmatprep.subr.mxu0 0.0
    %1553 = vmatpush1.msra.mxu0 %v158
    %1554 = vmatprep.subr.mxu0 0.0
    %1555 = vmatpush1.msra.mxu0 %v157
    %1556 = vmatprep.subr.mxu0 0.0
    %1557 = vmatpush1.msra.mxu0 %v156
    %1558 = vmatprep.subr.mxu0 0.0
    %1559 = vmatpush1.msra.mxu0 %v155
    %1560 = vmatprep.subr.mxu0 0.0
    %1561 = vmatpush1.msra.mxu0 %v154
    %1562 = vmatprep.subr.mxu0 0.0
    %1563 = vmatpush1.msra.mxu0 %v153
    %1564 = vmatprep.subr.mxu0 0.0
    %1565 = vmatpush1.msra.mxu0 %v152
    %1566 = vmatprep.subr.mxu0 0.0
    %1567 = vmatpush1.msra.mxu0 %v151
    %1568 = vmatprep.subr.mxu0 0.0
    %1569 = vmatpush1.msra.mxu0 %v150
    %1570 = vmatprep.subr.mxu0 0.0
    %1571 = vmatpush1.msra.mxu0 %v149
    %1572 = vmatprep.subr.mxu0 0.0
    %1573 = vmatpush1.msra.mxu0 %v148
    %1574 = vmatprep.subr.mxu0 0.0
    %1575 = vmatpush1.msra.mxu0 %v147
    %1576 = vmatprep.subr.mxu0 0.0
    %1577 = vmatpush1.msra.mxu0 %v146
    %1578 = vmatprep.subr.mxu0 0.0
    %1579 = vmatpush1.msra.mxu0 %v145
    %1580 = vmatprep.subr.mxu0 0.0
    %1581 = vmatpush2.msra.mxu0 0.0
    %1582 = vmatprep.subr.mxu0 0.0
    %1583 = vmatpush2.msra.mxu0 0.0
    %1584 = vmatprep.subr.mxu0 0.0
    %1585 = vmatpush2.msra.mxu0 0.0
    %1586 = vmatprep.subr.mxu0 0.0
    %1587 = vmatpush2.msra.mxu0 0.0
    %1588 = vmatprep.subr.mxu0 0.0
    %1589 = vmatpush2.msra.mxu0 0.0
    %1590 = vmatprep.subr.mxu0 0.0
    %1591 = vmatpush2.msra.mxu0 0.0
    %1592 = vmatprep.subr.mxu0 0.0
    %1593 = vmatpush2.msra.mxu0 0.0
    %1594 = vmatprep.subr.mxu0 0.0
    %1595 = vmatpush2.msra.mxu0 0.0
    %1596 = vmatprep.subr.mxu0 0.0
    %1597 = vmatpush2.msra.mxu0 0.0
    %1598 = vmatprep.subr.mxu0 0.0
    %1599 = vmatpush2.msra.mxu0 0.0
    %1600 = vmatprep.subr.mxu0 0.0
    %1601 = vmatpush2.msra.mxu0 0.0
    %1602 = vmatprep.subr.mxu0 0.0
    %1603 = vmatpush2.msra.mxu0 0.0
    %1604 = vmatprep.subr.mxu0 0.0
    %1605 = vmatpush2.msra.mxu0 0.0
    %1606 = vmatprep.subr.mxu0 0.0
    %1607 = vmatpush2.msra.mxu0 0.0
    %1608 = vmatprep.subr.mxu0 0.0
    %1609 = vmatpush2.msra.mxu0 0.0
    %1610 = vmatprep.subr.mxu0 0.0
    %1611 = vmatpush2.msra.mxu0 0.0
    %1612 = vmatprep.mubr.f32.mxu0 0.0
    %1613 = vmatmul.mubr.f32.gmra.mxu0 %v1477
    %v1614 = vpop.f32.mrf.mxu0
    %v1615 = vadd.f32 0.0, %v1614
    %v1616 = vpop.f32.mrf.mxu0
    %1617 = vdwg.mxu0
    %v1618 = vmul.f32 %v1545, %v1545
    %v1619 = vsub.f32 %v1615, %v1618
    %v1620 = vadd.f32 %v1619, 1e-05
    %v1621 = vrsqrt.pop %v1620
    %v1622 = vmul.f32 %v143, %v1621
    %v1623 = vmul.f32 %v1545, %v1622
    %v1624 = vsub.f32 %v144, %v1623
    %v1626 = vlaneseq
    %v1627 = vshrl.u32 %v1626, 7
    %v1628 = vsub.s32 0, %v1627
    %v1629 = vrot.slane %v1622, %v1628
    %v1631 = vmul.f32 %v1452, %v1629
    %v1632 = vmul.f32 %v1453, %v1629
    %v1633 = vmul.f32 %v1454, %v1629
    %v1634 = vmul.f32 %v1455, %v1629
    %v1636 = vlaneseq
    %v1637 = vshrl.u32 %v1636, 7
    %v1638 = vsub.s32 0, %v1637
    %v1639 = vrot.slane %v1624, %v1638
    %v1641 = vadd.f32 %v1631, %v1639
    %v1642 = vadd.f32 %v1632, %v1639
    %v1643 = vadd.f32 %v1633, %v1639
    %v1644 = vadd.f32 %v1634, %v1639
    %v1645 = vmax.f32 %v1641, 0.0
    %v1646 = vmax.f32 %v1642, 0.0
    %v1647 = vmax.f32 %v1643, 0.0
    %v1648 = vmax.f32 %v1644, 0.0
    %1649 = vst [vmem:[#allocation8] sm:$0xff] %v1645
    %1650 = vst [vmem:[#allocation8 + $0x8] sm:$0xff] %v1646
    %1651 = vst [vmem:[#allocation8 + $0x10] sm:$0xff] %v1647
    %1652 = vst [vmem:[#allocation8 + $0x18] sm:$0xff] %v1648
    // Predicated region
    $region34: #{tpu_custom_call.1} parent=1 // pred_check
      _
    $region35: #{tpu_custom_call.1} parent=1 // pred_check_branch
      %1654 = sbr.rel (0) target = $region37
    $region36: #{tpu_custom_call.1} parent=1 // pred_region
      %s1656 = ssub.s32 512, 512
      %1657 = vsyncadd [#allocation4], %s1656
      %s1658 = sshll.u32 [#allocation8], 4
      %s1659 = int_to_ptr.vmem [resolvable:$true] %s1658
      %1664 = dma.vmem_to_hbm [thread:$0]  %s1659, 512, %s5, [#allocation4], 128, 128, 8
    $region37: #{tpu_custom_call.1} parent=1 // pred_fallthru
      _
    // Predicated region
    $region38: #{tpu_custom_call.1} parent=1 // pred_check
      _
    $region39: #{tpu_custom_call.1} parent=1 // pred_check_branch
      %1666 = sbr.rel (0) target = $region41
    $region40: #{tpu_custom_call.1} parent=1 // pred_region
      %1667 = dma.done [#allocation4], 512
    $region41: #{tpu_custom_call.1} parent=1 // pred_fallthru
      _
    %1668 = vsyncpa [#allocation3], 1
    %1669 = vsyncpa [#allocation6], 1
    %1670 = vsyncpa [#allocation4], 1

</llo_original>
